<compile_context>
chip_gen: v7x
topology: tpu7x:2x2x1
jax: 0.10.0
libtpu: 0.0.40
codegen_flags: <defaults>
</compile_context>

<pallas_src>
import functools

import jax
import jax.numpy as jnp
from jax.experimental import pallas as pl
from jax.experimental.pallas import tpu as pltpu


def _round_up(v, m):
    return ((v + m - 1) // m) * m


def voicehd_kernel(x_ref, idw_ref, lvl_ref, amt_ref, out_ref, *, levels, low, high):
    # x_ref:   (TB, Epad)   f32   input features (padded feature columns map to zero id rows)
    # idw_ref: (Epad, TD)   bf16  Random-embedding (id) hypervectors, one D slice
    # lvl_ref: (L, TD)      f32   Thermometer level hypervectors (+-1), one D slice
    # amt_ref: (TD, Cpad)   f32   transposed, class-padded AM prototypes, one D slice
    # out_ref: (TB, Cpad)   f32   class scores; resident across the D (reduction) axis
    d = pl.program_id(1)

    @pl.when(d == 0)
    def _init():
        out_ref[...] = jnp.zeros_like(out_ref)

    # Thermometer value_to_index (+ clamp), computed once per kernel invocation.
    x = x_ref[...]
    norm = (x - low) / (high - low)
    idx = jnp.clip(jnp.round(norm * (levels - 1)).astype(jnp.int32), 0, levels - 1)

    idw = idw_ref[...]           # level-independent RHS, shared by all L matmuls
    lvl = lvl_ref[...]           # (L, TD), values +-1

    tb = x.shape[0]
    td = idw.shape[1]
    acc = jnp.zeros((tb, td), jnp.float32)
    # Static unroll over levels: mask in {0,1}, id_w in {+-1, 0}, level scale +-1,
    # so bf16 MXU matmul with f32 accumulation is bit-exact.
    for l in range(levels):
        mask = (idx == l).astype(jnp.bfloat16)                          # (TB, Epad)
        part = jnp.dot(mask, idw, preferred_element_type=jnp.float32)   # (TB, TD)
        acc = acc + lvl[l:l + 1, :] * part

    # Associative-memory dot-similarity, accumulated over D tiles.
    out_ref[...] += jnp.dot(acc, amt_ref[...], preferred_element_type=jnp.float32)


def prepare_params(id_w, level_w, am_w, *, block_d=None):
    """One-time, data-independent parameter packing/padding. Call once and cache."""
    E, D = id_w.shape
    L = level_w.shape[0]
    C = am_w.shape[0]

    if block_d is None:
        block_d = min(_round_up(D, 128), 2048)     # re-derive per TPU generation / D
    block_d = _round_up(block_d, 128)
    d_pad = _round_up(D, block_d)
    e_pad = max(128, _round_up(E, 128))            # lane-dense mask / full MXU K
    c_pad = max(128, _round_up(C, 128))            # lane-dense output slab

    id_p = jnp.zeros((e_pad, d_pad), jnp.bfloat16).at[:E, :D].set(
        id_w.astype(jnp.bfloat16))                                  # +-1 -> exact in bf16
    lvl_p = jnp.zeros((L, d_pad), jnp.float32).at[:, :D].set(level_w.astype(jnp.float32))
    am_t = jnp.zeros((d_pad, c_pad), jnp.float32).at[:D, :C].set(
        am_w.T.astype(jnp.float32))

    return dict(id_w=id_p, level_w=lvl_p, am_t=am_t,
                levels=L, entry_size=E, num_classes=C, block_d=block_d)


def voicehd_forward(x, params, *, low=-1.0, high=1.0, block_b=None, vmem_limit_bytes=None):
    B, E = x.shape
    assert E == params["entry_size"]
    id_w, lvl, am_t = params["id_w"], params["level_w"], params["am_t"]
    L, C, block_d = params["levels"], params["num_classes"], params["block_d"]
    e_pad, d_pad = id_w.shape
    c_pad = am_t.shape[1]
    n_d = d_pad // block_d

    if E < e_pad:
        # Padded feature columns hit all-zero id rows -> contribute nothing.
        x = jnp.pad(x, ((0, 0), (0, e_pad - E)))

    if block_b is None:
        block_b = min(B, 256)
        block_b = _round_up(block_b, 16 if block_b > 8 else 8)   # bf16 sublane packing
        block_b = min(block_b, 256)

    kernel = functools.partial(voicehd_kernel, levels=L, low=low, high=high)
    out = pl.pallas_call(
        kernel,
        out_shape=jax.ShapeDtypeStruct((B, c_pad), jnp.float32),
        grid_spec=pltpu.PrefetchScalarGridSpec(
            num_scalar_prefetch=0,
            grid=(pl.cdiv(B, block_b), n_d),            # D (reduction) axis last
            in_specs=[
                # x: constant over the D axis -> fetched once per batch tile.
                pl.BlockSpec((block_b, e_pad), lambda i, d: (i, 0)),
                # id hypervectors: one D slice per reduction step (double-buffered).
                pl.BlockSpec((e_pad, block_d), lambda i, d: (0, d)),
                # level hypervectors: tiny, one D slice per step.
                pl.BlockSpec((L, block_d), lambda i, d: (0, d)),
                # AM prototypes (transposed): one D slice per step.
                pl.BlockSpec((block_d, c_pad), lambda i, d: (d, 0)),
            ],
            out_specs=pl.BlockSpec((block_b, c_pad), lambda i, d: (i, 0)),
        ),
        compiler_params=pltpu.CompilerParams(
            dimension_semantics=("parallel", "arbitrary"),
            vmem_limit_bytes=vmem_limit_bytes,
        ),
    )(x, id_w, lvl, am_t)
    return out[:, :C]


def voicehd_reference(x, id_w, level_w, am_w, *, low=-1.0, high=1.0):
    # Pure-JAX reference mirroring the PyTorch module exactly.
    L = level_w.shape[0]
    norm = (x - low) / (high - low)
    idx = jnp.clip(jnp.round(norm * (L - 1)).astype(jnp.int32), 0, L - 1)
    lv = level_w[idx]                        # (B, E, D)  Thermometer lookup
    bound = id_w[None, :, :] * lv            # bind (MAP)
    enc = bound.sum(axis=1)                  # multiset
    return jnp.dot(enc, am_w.T, precision=jax.lax.Precision.HIGHEST)  # AM search


if __name__ == "__main__":
    # Small, module-consistent shapes.
    batch = 8
    entry_size = 16     # number of input features (VoiceHD frequency bins)
    levels = 8          # Thermometer quantization levels
    dimensions = 512    # hypervector dimensionality
    num_classes = 10

    key = jax.random.PRNGKey(0)
    kx, kid, kam = jax.random.split(key, 3)

    # Input features in [-1, 1] (Thermometer low/high).
    x = jax.random.uniform(kx, (batch, entry_size), jnp.float32, minval=-1.0, maxval=1.0)

    # embeddings.Random: +/-1 MAP hypervectors per feature position.
    id_w = jnp.where(jax.random.bernoulli(kid, 0.5, (entry_size, dimensions)), 1.0, -1.0)

    # embeddings.Thermometer: level i has the first round(i*D/(L-1)) entries +1, rest -1.
    thresh = jnp.round(jnp.arange(levels) * dimensions / (levels - 1)).astype(jnp.int32)
    level_w = jnp.where(
        jnp.arange(dimensions)[None, :] < thresh[:, None], 1.0, -1.0
    ).astype(jnp.float32)

    # Associative-memory (Centroid-style) class prototypes; synthetic init.
    # TODO(synk): am.train_am() / create_am() training loop is out of scope here.
    am_w = jax.random.normal(kam, (num_classes, dimensions), jnp.float32)

    # Pack/pad parameters once (data-independent), then run the kernel.
    params = prepare_params(id_w, level_w, am_w)
    out = voicehd_forward(x, params)
    out = jax.block_until_ready(out)

    ref = voicehd_reference(x, id_w, level_w, am_w)
    assert out.shape == (batch, num_classes)
    assert jnp.allclose(out, ref, rtol=1e-4, atol=1e-4)

    print("KERNEL_OK")
</pallas_src>

<mosaic_0001>
module attributes {stable_mosaic.version = 11 : i64} {
  func.func @voicehd_kernel(%arg0: i32, %arg1: i32, %arg2: memref<8x128xf32, #tpu.memory_space<vmem>>, %arg3: memref<128x512xbf16, #tpu.memory_space<vmem>>, %arg4: memref<8x512xf32, #tpu.memory_space<vmem>>, %arg5: memref<512x128xf32, #tpu.memory_space<vmem>>, %arg6: memref<8x128xf32, #tpu.memory_space<vmem>>) attributes {dimension_semantics = [#tpu.dimension_semantics<parallel>, #tpu.dimension_semantics<arbitrary>], iteration_bounds = array<i64: 1, 1>, scalar_prefetch = 0 : i64, scratch_operands = 0 : i64, tpu.core_type = #tpu.core_type<tc>, window_params = [{transform_indices = @transform_0, window_bounds = array<i64: 8, 128>}, {transform_indices = @transform_1, window_bounds = array<i64: 128, 512>}, {transform_indices = @transform_2, window_bounds = array<i64: 8, 512>}, {transform_indices = @transform_3, window_bounds = array<i64: 512, 128>}, {transform_indices = @transform_4, window_bounds = array<i64: 8, 128>}]} {
    %c0_i32 = arith.constant 0 : i32
    %0 = arith.cmpi eq, %arg1, %c0_i32 : i32
    %1 = arith.extui %0 : i1 to i32
    %c0_i32_0 = arith.constant 0 : i32
    %2 = arith.cmpi ne, %1, %c0_i32_0 : i32
    scf.if %2 {
      %cst_27 = arith.constant 0.000000e+00 : f32
      %104 = vector.broadcast %cst_27 : f32 to vector<8x128xf32>
      %c0_28 = arith.constant 0 : index
      %c0_29 = arith.constant 0 : index
      %105 = vector.load %arg6[%c0_28, %c0_29] : memref<8x128xf32, #tpu.memory_space<vmem>>, vector<8x128xf32>
      tpu.vector_store %arg6[%c0_28, %c0_29], %104 {strides = array<i32>} : memref<8x128xf32, #tpu.memory_space<vmem>>, vector<8x128xf32>,
    } else {
    }
    %c0 = arith.constant 0 : index
    %c0_1 = arith.constant 0 : index
    %3 = vector.load %arg2[%c0, %c0_1] : memref<8x128xf32, #tpu.memory_space<vmem>>, vector<8x128xf32>
    %cst = arith.constant -1.000000e+00 : f32
    %4 = vector.broadcast %cst : f32 to vector<8x128xf32>
    %5 = arith.subf %3, %4 : vector<8x128xf32>
    %cst_2 = arith.constant 2.000000e+00 : f32
    %6 = vector.broadcast %cst_2 : f32 to vector<8x128xf32>
    %7 = arith.divf %5, %6 : vector<8x128xf32>
    %cst_3 = arith.constant 7.000000e+00 : f32
    %8 = vector.broadcast %cst_3 : f32 to vector<8x128xf32>
    %9 = arith.mulf %7, %8 : vector<8x128xf32>
    %10 = math.roundeven %9 : vector<8x128xf32>
    %11 = arith.fptosi %10 : vector<8x128xf32> to vector<8x128xi32>
    %c0_i32_4 = arith.constant 0 : i32
    %c7_i32 = arith.constant 7 : i32
    %12 = vector.broadcast %c0_i32_4 : i32 to vector<8x128xi32>
    %13 = arith.maxsi %12, %11 : vector<8x128xi32>
    %14 = vector.broadcast %c7_i32 : i32 to vector<8x128xi32>
    %15 = arith.minsi %14, %13 : vector<8x128xi32>
    %c0_5 = arith.constant 0 : index
    %c0_6 = arith.constant 0 : index
    %16 = vector.load %arg3[%c0_5, %c0_6] : memref<128x512xbf16, #tpu.memory_space<vmem>>, vector<128x512xbf16>
    %c0_7 = arith.constant 0 : index
    %c0_8 = arith.constant 0 : index
    %17 = vector.load %arg4[%c0_7, %c0_8] : memref<8x512xf32, #tpu.memory_space<vmem>>, vector<8x512xf32>
    %cst_9 = arith.constant 0.000000e+00 : f32
    %18 = vector.broadcast %cst_9 : f32 to vector<8x512xf32>
    %c0_i32_10 = arith.constant 0 : i32
    %19 = vector.broadcast %c0_i32_10 : i32 to vector<8x128xi32>
    %20 = arith.cmpi eq, %15, %19 : vector<8x128xi32>
    %21 = arith.extui %20 : vector<8x128xi1> to vector<8x128xi32>
    %22 = arith.sitofp %21 : vector<8x128xi32> to vector<8x128xf32>
    %23 = arith.truncf %22 : vector<8x128xf32> to vector<8x128xbf16>
    %cst_11 = arith.constant dense<0.000000e+00> : vector<8x512xf32>
    %24 = tpu.matmul %23, %16, %cst_11 {dimension_numbers = #tpu.dot_dimension_numbers<[1], [0], [0], [1], [0, 0, 1, 1], [], []>} : vector<8x128xbf16>, vector<128x512xbf16>, vector<8x512xf32> -> vector<8x512xf32>
    %25 = vector.extract_strided_slice %17 {offsets = [0, 0], sizes = [1, 512], strides = [1, 1]} : vector<8x512xf32> to vector<1x512xf32>
    %26 = vector.broadcast %25 : vector<1x512xf32> to vector<8x512xf32>
    %27 = arith.mulf %26, %24 : vector<8x512xf32>
    %28 = arith.addf %18, %27 : vector<8x512xf32>
    %c1_i32 = arith.constant 1 : i32
    %29 = vector.broadcast %c1_i32 : i32 to vector<8x128xi32>
    %30 = arith.cmpi eq, %15, %29 : vector<8x128xi32>
    %31 = arith.extui %30 : vector<8x128xi1> to vector<8x128xi32>
    %32 = arith.sitofp %31 : vector<8x128xi32> to vector<8x128xf32>
    %33 = arith.truncf %32 : vector<8x128xf32> to vector<8x128xbf16>
    %cst_12 = arith.constant dense<0.000000e+00> : vector<8x512xf32>
    %34 = tpu.matmul %33, %16, %cst_12 {dimension_numbers = #tpu.dot_dimension_numbers<[1], [0], [0], [1], [0, 0, 1, 1], [], []>} : vector<8x128xbf16>, vector<128x512xbf16>, vector<8x512xf32> -> vector<8x512xf32>
    %35 = vector.extract_strided_slice %17 {offsets = [1, 0], sizes = [1, 512], strides = [1, 1]} : vector<8x512xf32> to vector<1x512xf32>
    %36 = vector.broadcast %35 : vector<1x512xf32> to vector<8x512xf32>
    %37 = arith.mulf %36, %34 : vector<8x512xf32>
    %38 = arith.addf %28, %37 : vector<8x512xf32>
    %c2_i32 = arith.constant 2 : i32
    %39 = vector.broadcast %c2_i32 : i32 to vector<8x128xi32>
    %40 = arith.cmpi eq, %15, %39 : vector<8x128xi32>
    %41 = arith.extui %40 : vector<8x128xi1> to vector<8x128xi32>
    %42 = arith.sitofp %41 : vector<8x128xi32> to vector<8x128xf32>
    %43 = arith.truncf %42 : vector<8x128xf32> to vector<8x128xbf16>
    %cst_13 = arith.constant dense<0.000000e+00> : vector<8x512xf32>
    %44 = tpu.matmul %43, %16, %cst_13 {dimension_numbers = #tpu.dot_dimension_numbers<[1], [0], [0], [1], [0, 0, 1, 1], [], []>} : vector<8x128xbf16>, vector<128x512xbf16>, vector<8x512xf32> -> vector<8x512xf32>
    %45 = vector.extract_strided_slice %17 {offsets = [2, 0], sizes = [1, 512], strides = [1, 1]} : vector<8x512xf32> to vector<1x512xf32>
    %46 = vector.broadcast %45 : vector<1x512xf32> to vector<8x512xf32>
    %47 = arith.mulf %46, %44 : vector<8x512xf32>
    %48 = arith.addf %38, %47 : vector<8x512xf32>
    %c3_i32 = arith.constant 3 : i32
    %49 = vector.broadcast %c3_i32 : i32 to vector<8x128xi32>
    %50 = arith.cmpi eq, %15, %49 : vector<8x128xi32>
    %51 = arith.extui %50 : vector<8x128xi1> to vector<8x128xi32>
    %52 = arith.sitofp %51 : vector<8x128xi32> to vector<8x128xf32>
    %53 = arith.truncf %52 : vector<8x128xf32> to vector<8x128xbf16>
    %cst_14 = arith.constant dense<0.000000e+00> : vector<8x512xf32>
    %54 = tpu.matmul %53, %16, %cst_14 {dimension_numbers = #tpu.dot_dimension_numbers<[1], [0], [0], [1], [0, 0, 1, 1], [], []>} : vector<8x128xbf16>, vector<128x512xbf16>, vector<8x512xf32> -> vector<8x512xf32>
    %55 = vector.extract_strided_slice %17 {offsets = [3, 0], sizes = [1, 512], strides = [1, 1]} : vector<8x512xf32> to vector<1x512xf32>
    %56 = vector.broadcast %55 : vector<1x512xf32> to vector<8x512xf32>
    %57 = arith.mulf %56, %54 : vector<8x512xf32>
    %58 = arith.addf %48, %57 : vector<8x512xf32>
    %c4_i32 = arith.constant 4 : i32
    %59 = vector.broadcast %c4_i32 : i32 to vector<8x128xi32>
    %60 = arith.cmpi eq, %15, %59 : vector<8x128xi32>
    %61 = arith.extui %60 : vector<8x128xi1> to vector<8x128xi32>
    %62 = arith.sitofp %61 : vector<8x128xi32> to vector<8x128xf32>
    %63 = arith.truncf %62 : vector<8x128xf32> to vector<8x128xbf16>
    %cst_15 = arith.constant dense<0.000000e+00> : vector<8x512xf32>
    %64 = tpu.matmul %63, %16, %cst_15 {dimension_numbers = #tpu.dot_dimension_numbers<[1], [0], [0], [1], [0, 0, 1, 1], [], []>} : vector<8x128xbf16>, vector<128x512xbf16>, vector<8x512xf32> -> vector<8x512xf32>
    %65 = vector.extract_strided_slice %17 {offsets = [4, 0], sizes = [1, 512], strides = [1, 1]} : vector<8x512xf32> to vector<1x512xf32>
    %66 = vector.broadcast %65 : vector<1x512xf32> to vector<8x512xf32>
    %67 = arith.mulf %66, %64 : vector<8x512xf32>
    %68 = arith.addf %58, %67 : vector<8x512xf32>
    %c5_i32 = arith.constant 5 : i32
    %69 = vector.broadcast %c5_i32 : i32 to vector<8x128xi32>
    %70 = arith.cmpi eq, %15, %69 : vector<8x128xi32>
    %71 = arith.extui %70 : vector<8x128xi1> to vector<8x128xi32>
    %72 = arith.sitofp %71 : vector<8x128xi32> to vector<8x128xf32>
    %73 = arith.truncf %72 : vector<8x128xf32> to vector<8x128xbf16>
    %cst_16 = arith.constant dense<0.000000e+00> : vector<8x512xf32>
    %74 = tpu.matmul %73, %16, %cst_16 {dimension_numbers = #tpu.dot_dimension_numbers<[1], [0], [0], [1], [0, 0, 1, 1], [], []>} : vector<8x128xbf16>, vector<128x512xbf16>, vector<8x512xf32> -> vector<8x512xf32>
    %75 = vector.extract_strided_slice %17 {offsets = [5, 0], sizes = [1, 512], strides = [1, 1]} : vector<8x512xf32> to vector<1x512xf32>
    %76 = vector.broadcast %75 : vector<1x512xf32> to vector<8x512xf32>
    %77 = arith.mulf %76, %74 : vector<8x512xf32>
    %78 = arith.addf %68, %77 : vector<8x512xf32>
    %c6_i32 = arith.constant 6 : i32
    %79 = vector.broadcast %c6_i32 : i32 to vector<8x128xi32>
    %80 = arith.cmpi eq, %15, %79 : vector<8x128xi32>
    %81 = arith.extui %80 : vector<8x128xi1> to vector<8x128xi32>
    %82 = arith.sitofp %81 : vector<8x128xi32> to vector<8x128xf32>
    %83 = arith.truncf %82 : vector<8x128xf32> to vector<8x128xbf16>
    %cst_17 = arith.constant dense<0.000000e+00> : vector<8x512xf32>
    %84 = tpu.matmul %83, %16, %cst_17 {dimension_numbers = #tpu.dot_dimension_numbers<[1], [0], [0], [1], [0, 0, 1, 1], [], []>} : vector<8x128xbf16>, vector<128x512xbf16>, vector<8x512xf32> -> vector<8x512xf32>
    %85 = vector.extract_strided_slice %17 {offsets = [6, 0], sizes = [1, 512], strides = [1, 1]} : vector<8x512xf32> to vector<1x512xf32>
    %86 = vector.broadcast %85 : vector<1x512xf32> to vector<8x512xf32>
    %87 = arith.mulf %86, %84 : vector<8x512xf32>
    %88 = arith.addf %78, %87 : vector<8x512xf32>
    %c7_i32_18 = arith.constant 7 : i32
    %89 = vector.broadcast %c7_i32_18 : i32 to vector<8x128xi32>
    %90 = arith.cmpi eq, %15, %89 : vector<8x128xi32>
    %91 = arith.extui %90 : vector<8x128xi1> to vector<8x128xi32>
    %92 = arith.sitofp %91 : vector<8x128xi32> to vector<8x128xf32>
    %93 = arith.truncf %92 : vector<8x128xf32> to vector<8x128xbf16>
    %cst_19 = arith.constant dense<0.000000e+00> : vector<8x512xf32>
    %94 = tpu.matmul %93, %16, %cst_19 {dimension_numbers = #tpu.dot_dimension_numbers<[1], [0], [0], [1], [0, 0, 1, 1], [], []>} : vector<8x128xbf16>, vector<128x512xbf16>, vector<8x512xf32> -> vector<8x512xf32>
    %95 = vector.extract_strided_slice %17 {offsets = [7, 0], sizes = [1, 512], strides = [1, 1]} : vector<8x512xf32> to vector<1x512xf32>
    %96 = vector.broadcast %95 : vector<1x512xf32> to vector<8x512xf32>
    %97 = arith.mulf %96, %94 : vector<8x512xf32>
    %98 = arith.addf %88, %97 : vector<8x512xf32>
    %c0_20 = arith.constant 0 : index
    %c0_21 = arith.constant 0 : index
    %99 = vector.load %arg6[%c0_20, %c0_21] : memref<8x128xf32, #tpu.memory_space<vmem>>, vector<8x128xf32>
    %c0_22 = arith.constant 0 : index
    %c0_23 = arith.constant 0 : index
    %100 = vector.load %arg5[%c0_22, %c0_23] : memref<512x128xf32, #tpu.memory_space<vmem>>, vector<512x128xf32>
    %cst_24 = arith.constant dense<0.000000e+00> : vector<8x128xf32>
    %101 = tpu.matmul %98, %100, %cst_24 {dimension_numbers = #tpu.dot_dimension_numbers<[1], [0], [0], [1], [0, 0, 1, 1], [], []>} : vector<8x512xf32>, vector<512x128xf32>, vector<8x128xf32> -> vector<8x128xf32>
    %102 = arith.addf %99, %101 : vector<8x128xf32>
    %c0_25 = arith.constant 0 : index
    %c0_26 = arith.constant 0 : index
    %103 = vector.load %arg6[%c0_25, %c0_26] : memref<8x128xf32, #tpu.memory_space<vmem>>, vector<8x128xf32>
    tpu.vector_store %arg6[%c0_25, %c0_26], %102 {strides = array<i32>} : memref<8x128xf32, #tpu.memory_space<vmem>>, vector<8x128xf32>,
    return
  }
  func.func @transform_0(%arg0: i32, %arg1: i32) -> (i32, i32) {
    %c0_i32 = arith.constant 0 : i32
    %c0_i32_0 = arith.constant 0 : i32
    return %arg0, %c0_i32 : i32, i32
  }
  func.func @transform_1(%arg0: i32, %arg1: i32) -> (i32, i32) {
    %c0_i32 = arith.constant 0 : i32
    %c0_i32_0 = arith.constant 0 : i32
    return %c0_i32, %arg1 : i32, i32
  }
  func.func @transform_2(%arg0: i32, %arg1: i32) -> (i32, i32) {
    %c0_i32 = arith.constant 0 : i32
    %c0_i32_0 = arith.constant 0 : i32
    return %c0_i32, %arg1 : i32, i32
  }
  func.func @transform_3(%arg0: i32, %arg1: i32) -> (i32, i32) {
    %c0_i32 = arith.constant 0 : i32
    %c0_i32_0 = arith.constant 0 : i32
    return %arg1, %c0_i32 : i32, i32
  }
  func.func @transform_4(%arg0: i32, %arg1: i32) -> (i32, i32) {
    %c0_i32 = arith.constant 0 : i32
    %c0_i32_0 = arith.constant 0 : i32
    return %arg0, %c0_i32 : i32, i32
  }
}

</mosaic_0001>

<llo_original>
// kernel: tpu_custom_call.1
$region0: #{tpu_custom_call.1}
  #allocation0 [shape = 'u32[]', space=smem, size = 0x4, offset = 0x4, fixed_abs, tag = 'smem constant byte address 0x4 - core index']
  #allocation1 [shape = 'u32[144,128]{1,0:T(1,128)}', space=vmem, size = 0x12000, scoped, tag = 'internal scratch']
  %s0 = inlined_call_operand.hbm [shape: f32[8,128], index: 0, kind: input, shape index: {}]
  %s1 = inlined_call_operand.hbm [shape: bf16[128,512], index: 1, kind: input, shape index: {}]
  %s2 = inlined_call_operand.hbm [shape: f32[8,512], index: 2, kind: input, shape index: {}]
  %s3 = inlined_call_operand.hbm [shape: f32[512,128], index: 3, kind: input, shape index: {}]
  %s4 = inlined_call_operand.hbm [shape: f32[8,128], index: 4, kind: output, shape index: {}]
  %s5 = sld [smem:[#allocation0]]
  $region46: #{tpu_custom_call.1} parent=0
    _
  %s7 = ssub.s32 1, %s5
  %s8 = scalar_select 0, %s7, %s5
  $region1: #{tpu_custom_call.1} parent=0
    #allocation2 [shape = 'u8[4096]{0}', space=vmem, size = 0x1000, scoped, tag = 'input window, operand 0, single buffered']
    #allocation3 [shape = 's32[1]{0}', space=sflag, size = 0x4, scoped, tag = 'scoped memory for tpu_custom_call.1']
    #allocation4 [shape = 's32[1]{0}', space=sflag, size = 0x4, scoped, tag = 'scoped memory for tpu_custom_call.1']
    #allocation5 [shape = 'u8[131072]{0}', space=vmem, size = 0x20000, scoped, tag = 'input window, operand 1, single buffered']
    #allocation6 [shape = 's32[1]{0}', space=sflag, size = 0x4, scoped, tag = 'scoped memory for tpu_custom_call.1']
    #allocation7 [shape = 'u8[16384]{0}', space=vmem, size = 0x4000, scoped, tag = 'input window, operand 2, single buffered']
    #allocation8 [shape = 'u8[262144]{0}', space=vmem, size = 0x40000, scoped, tag = 'input window, operand 3, single buffered']
    #allocation9 [shape = 's32[1]{0}', space=sflag, size = 0x4, scoped, tag = 'scoped memory for tpu_custom_call.1']
    #allocation10 [shape = 'u8[4096]{0}', space=vmem, size = 0x1000, scoped, tag = 'output window, operand 0, single buffered']
    %9 = vsyncpa [#allocation3], 0
    %10 = vsyncpa [#allocation6], 0
    %11 = vsyncpa [#allocation9], 0
    %12 = vsyncpa [#allocation4], 0
    // Predicated region
    $region2: #{tpu_custom_call.1} parent=1 // pred_check
      _
    $region3: #{tpu_custom_call.1} parent=1 // pred_check_branch
      %14 = sbr.rel (0) target = $region5
    $region4: #{tpu_custom_call.1} parent=1 // pred_region
      %s16 = ssub.s32 128, 128
      %17 = vsyncadd [#allocation3], %s16
      %s19 = sshll.u32 [#allocation2], 4
      %s20 = int_to_ptr.vmem [resolvable:$true] %s19
      %22 = dma.hbm_to_vmem [thread:$0]  %s0, 128, %s20, [#allocation3]
    $region5: #{tpu_custom_call.1} parent=1 // pred_fallthru
      _
    // Predicated region
    $region6: #{tpu_custom_call.1} parent=1 // pred_check
      _
    $region7: #{tpu_custom_call.1} parent=1 // pred_check_branch
      %24 = sbr.rel (0) target = $region9
    $region8: #{tpu_custom_call.1} parent=1 // pred_region
      %s26 = ssub.s32 4096, 4096
      %27 = vsyncadd [#allocation6], %s26
      %s28 = sshll.u32 [#allocation5], 4
      %s29 = int_to_ptr.vmem [resolvable:$true] %s28
      %34 = dma.hbm_to_vmem [thread:$0]  %s1, 4096, %s29, [#allocation6], 256, 256, 16
    $region9: #{tpu_custom_call.1} parent=1 // pred_fallthru
      _
    // Predicated region
    $region10: #{tpu_custom_call.1} parent=1 // pred_check
      _
    $region11: #{tpu_custom_call.1} parent=1 // pred_check_branch
      %36 = sbr.rel (0) target = $region13
    $region12: #{tpu_custom_call.1} parent=1 // pred_region
      %s38 = ssub.s32 512, 512
      %39 = vsyncadd [#allocation6], %s38
      %s41 = sshll.u32 [#allocation7], 4
      %s42 = int_to_ptr.vmem [resolvable:$true] %s41
      %44 = dma.hbm_to_vmem [thread:$0]  %s2, 512, %s42, [#allocation6]
    $region13: #{tpu_custom_call.1} parent=1 // pred_fallthru
      _
    // Predicated region
    $region14: #{tpu_custom_call.1} parent=1 // pred_check
      _
    $region15: #{tpu_custom_call.1} parent=1 // pred_check_branch
      %46 = sbr.rel (0) target = $region17
    $region16: #{tpu_custom_call.1} parent=1 // pred_region
      %s48 = ssub.s32 8192, 8192
      %49 = vsyncadd [#allocation9], %s48
      %s50 = sshll.u32 [#allocation8], 4
      %s51 = int_to_ptr.vmem [resolvable:$true] %s50
      %56 = dma.hbm_to_vmem [thread:$0]  %s3, 8192, %s51, [#allocation9], 128, 128, 8
    $region17: #{tpu_custom_call.1} parent=1 // pred_fallthru
      _
    // Predicated region
    $region18: #{tpu_custom_call.1} parent=1 // pred_check
      _
    $region19: #{tpu_custom_call.1} parent=1 // pred_check_branch
      %58 = sbr.rel (0) target = $region21
    $region20: #{tpu_custom_call.1} parent=1 // pred_region
      %59 = dma.done [#allocation3], 128
    $region21: #{tpu_custom_call.1} parent=1 // pred_fallthru
      _
    // Predicated region
    $region22: #{tpu_custom_call.1} parent=1 // pred_check
      _
    $region23: #{tpu_custom_call.1} parent=1 // pred_check_branch
      %61 = sbr.rel (0) target = $region25
    $region24: #{tpu_custom_call.1} parent=1 // pred_region
      %62 = dma.done [#allocation6], 4096
    $region25: #{tpu_custom_call.1} parent=1 // pred_fallthru
      _
    // Predicated region
    $region26: #{tpu_custom_call.1} parent=1 // pred_check
      _
    $region27: #{tpu_custom_call.1} parent=1 // pred_check_branch
      %64 = sbr.rel (0) target = $region29
    $region28: #{tpu_custom_call.1} parent=1 // pred_region
      %65 = dma.done [#allocation6], 512
    $region29: #{tpu_custom_call.1} parent=1 // pred_fallthru
      _
    // Predicated region
    $region30: #{tpu_custom_call.1} parent=1 // pred_check
      _
    $region31: #{tpu_custom_call.1} parent=1 // pred_check_branch
      %67 = sbr.rel (0) target = $region33
    $region32: #{tpu_custom_call.1} parent=1 // pred_region
      %68 = dma.done [#allocation9], 8192
    $region33: #{tpu_custom_call.1} parent=1 // pred_fallthru
      _
    %p70 = scmp.eq.s32.totalorder 0, 0
    // Predicated region
    $region34: #{tpu_custom_call.1} parent=1 // pred_check
      %p71 = pneg %p70
    $region35: #{tpu_custom_call.1} parent=1 // pred_check_branch
      %73 = sbr.rel (%p71) target = $region37
    $region36: #{tpu_custom_call.1} parent=1 // pred_region
      %74 = vst [vmem:[#allocation10] sm:$0xff] 0.0
    $region37: #{tpu_custom_call.1} parent=1 // pred_fallthru
      _
    %v75 = vld [vmem:[#allocation2] sm:$0xff]
    %v76 = vsub.f32 %v75, -1.0
    %v77 = vrcp.pop 2.0
    %v78 = vmul.f32 %v76, %v77
    %v79 = vmul.f32 %v78, 7.0
    %v80 = vcvt.f32.s32.ties.to.even %v79
    %vm81 = vcmp.gt.s32.totalorder %v80, 0
    %v82 = vsel %vm81, %v80, 0
    %vm83 = vcmp.lt.s32.totalorder %v82, 7
    %v84 = vsel %vm83, %v82, 7
    %v85 = vld [vmem:[#allocation5] sm:$0xff]
    %v86 = vld [vmem:[#allocation5 + $0x8] sm:$0xff]
    %v87 = vld [vmem:[#allocation5 + $0x10] sm:$0xff]
    %v88 = vld [vmem:[#allocation5 + $0x18] sm:$0xff]
    %v89 = vld [vmem:[#allocation5 + $0x20] sm:$0xff]
    %v90 = vld [vmem:[#allocation5 + $0x28] sm:$0xff]
    %v91 = vld [vmem:[#allocation5 + $0x30] sm:$0xff]
    %v92 = vld [vmem:[#allocation5 + $0x38] sm:$0xff]
    %v93 = vld [vmem:[#allocation5 + $0x40] sm:$0xff]
    %v94 = vld [vmem:[#allocation5 + $0x48] sm:$0xff]
    %v95 = vld [vmem:[#allocation5 + $0x50] sm:$0xff]
    %v96 = vld [vmem:[#allocation5 + $0x58] sm:$0xff]
    %v97 = vld [vmem:[#allocation5 + $0x60] sm:$0xff]
    %v98 = vld [vmem:[#allocation5 + $0x68] sm:$0xff]
    %v99 = vld [vmem:[#allocation5 + $0x70] sm:$0xff]
    %v100 = vld [vmem:[#allocation5 + $0x78] sm:$0xff]
    %v101 = vld [vmem:[#allocation5 + $0x80] sm:$0xff]
    %v102 = vld [vmem:[#allocation5 + $0x88] sm:$0xff]
    %v103 = vld [vmem:[#allocation5 + $0x90] sm:$0xff]
    %v104 = vld [vmem:[#allocation5 + $0x98] sm:$0xff]
    %v105 = vld [vmem:[#allocation5 + $0xa0] sm:$0xff]
    %v106 = vld [vmem:[#allocation5 + $0xa8] sm:$0xff]
    %v107 = vld [vmem:[#allocation5 + $0xb0] sm:$0xff]
    %v108 = vld [vmem:[#allocation5 + $0xb8] sm:$0xff]
    %v109 = vld [vmem:[#allocation5 + $0xc0] sm:$0xff]
    %v110 = vld [vmem:[#allocation5 + $0xc8] sm:$0xff]
    %v111 = vld [vmem:[#allocation5 + $0xd0] sm:$0xff]
    %v112 = vld [vmem:[#allocation5 + $0xd8] sm:$0xff]
    %v113 = vld [vmem:[#allocation5 + $0xe0] sm:$0xff]
    %v114 = vld [vmem:[#allocation5 + $0xe8] sm:$0xff]
    %v115 = vld [vmem:[#allocation5 + $0xf0] sm:$0xff]
    %v116 = vld [vmem:[#allocation5 + $0xf8] sm:$0xff]
    %v117 = vld [vmem:[#allocation7] sm:$0xff]
    %v118 = vld [vmem:[#allocation7 + $0x8] sm:$0xff]
    %v119 = vld [vmem:[#allocation7 + $0x10] sm:$0xff]
    %v120 = vld [vmem:[#allocation7 + $0x18] sm:$0xff]
    %vm121 = vcmp.eq.s32.totalorder %v84, 0
    %v122 = vsel %vm121, 1, 0
    %v123 = vcvt.s32.f32 %v122
    %v124 = vpack.c.bf16 %v123, %v123
    %v157 = vunpack.c.l.b16 %v85
    %v158 = vunpack.c.h.b16 %v85
    %v159 = vunpack.c.l.b16 %v86
    %v160 = vunpack.c.h.b16 %v86
    %v161 = vunpack.c.l.b16 %v87
    %v162 = vunpack.c.h.b16 %v87
    %v163 = vunpack.c.l.b16 %v88
    %v164 = vunpack.c.h.b16 %v88
    %v165 = vunpack.c.l.b16 %v89
    %v166 = vunpack.c.h.b16 %v89
    %v167 = vunpack.c.l.b16 %v90
    %v168 = vunpack.c.h.b16 %v90
    %v169 = vunpack.c.l.b16 %v91
    %v170 = vunpack.c.h.b16 %v91
    %v171 = vunpack.c.l.b16 %v92
    %v172 = vunpack.c.h.b16 %v92
    %v173 = vunpack.c.l.b16 %v93
    %v174 = vunpack.c.h.b16 %v93
    %v175 = vunpack.c.l.b16 %v94
    %v176 = vunpack.c.h.b16 %v94
    %v177 = vunpack.c.l.b16 %v95
    %v178 = vunpack.c.h.b16 %v95
    %v179 = vunpack.c.l.b16 %v96
    %v180 = vunpack.c.h.b16 %v96
    %v181 = vunpack.c.l.b16 %v97
    %v182 = vunpack.c.h.b16 %v97
    %v183 = vunpack.c.l.b16 %v98
    %v184 = vunpack.c.h.b16 %v98
    %v185 = vunpack.c.l.b16 %v99
    %v186 = vunpack.c.h.b16 %v99
    %v187 = vunpack.c.l.b16 %v100
    %v188 = vunpack.c.h.b16 %v100
    %v189 = vunpack.c.l.b16 %v101
    %v190 = vunpack.c.h.b16 %v101
    %v191 = vunpack.c.l.b16 %v102
    %v192 = vunpack.c.h.b16 %v102
    %v193 = vunpack.c.l.b16 %v103
    %v194 = vunpack.c.h.b16 %v103
    %v195 = vunpack.c.l.b16 %v104
    %v196 = vunpack.c.h.b16 %v104
    %v197 = vunpack.c.l.b16 %v105
    %v198 = vunpack.c.h.b16 %v105
    %v199 = vunpack.c.l.b16 %v106
    %v200 = vunpack.c.h.b16 %v106
    %v201 = vunpack.c.l.b16 %v107
    %v202 = vunpack.c.h.b16 %v107
    %v203 = vunpack.c.l.b16 %v108
    %v204 = vunpack.c.h.b16 %v108
    %v205 = vunpack.c.l.b16 %v109
    %v206 = vunpack.c.h.b16 %v109
    %v207 = vunpack.c.l.b16 %v110
    %v208 = vunpack.c.h.b16 %v110
    %v209 = vunpack.c.l.b16 %v111
    %v210 = vunpack.c.h.b16 %v111
    %v211 = vunpack.c.l.b16 %v112
    %v212 = vunpack.c.h.b16 %v112
    %v213 = vunpack.c.l.b16 %v113
    %v214 = vunpack.c.h.b16 %v113
    %v215 = vunpack.c.l.b16 %v114
    %v216 = vunpack.c.h.b16 %v114
    %v217 = vunpack.c.l.b16 %v115
    %v218 = vunpack.c.h.b16 %v115
    %v219 = vunpack.c.l.b16 %v116
    %v220 = vunpack.c.h.b16 %v116
    %v221 = vpack.c.b16 %v161, %v157
    %v222 = vpack.c.b16 %v162, %v158
    %v223 = vpack.c.b16 %v163, %v159
    %v224 = vpack.c.b16 %v164, %v160
    %v225 = vpack.c.b16 %v169, %v165
    %v226 = vpack.c.b16 %v170, %v166
    %v227 = vpack.c.b16 %v171, %v167
    %v228 = vpack.c.b16 %v172, %v168
    %v229 = vpack.c.b16 %v177, %v173
    %v230 = vpack.c.b16 %v178, %v174
    %v231 = vpack.c.b16 %v179, %v175
    %v232 = vpack.c.b16 %v180, %v176
    %v233 = vpack.c.b16 %v185, %v181
    %v234 = vpack.c.b16 %v186, %v182
    %v235 = vpack.c.b16 %v187, %v183
    %v236 = vpack.c.b16 %v188, %v184
    %v237 = vpack.c.b16 %v193, %v189
    %v238 = vpack.c.b16 %v194, %v190
    %v239 = vpack.c.b16 %v195, %v191
    %v240 = vpack.c.b16 %v196, %v192
    %v241 = vpack.c.b16 %v201, %v197
    %v242 = vpack.c.b16 %v202, %v198
    %v243 = vpack.c.b16 %v203, %v199
    %v244 = vpack.c.b16 %v204, %v200
    %v245 = vpack.c.b16 %v209, %v205
    %v246 = vpack.c.b16 %v210, %v206
    %v247 = vpack.c.b16 %v211, %v207
    %v248 = vpack.c.b16 %v212, %v208
    %v249 = vpack.c.b16 %v217, %v213
    %v250 = vpack.c.b16 %v218, %v214
    %v251 = vpack.c.b16 %v219, %v215
    %v252 = vpack.c.b16 %v220, %v216
    %285 = vmatprep.subr.bf16.mxu0 %v222
    %286 = vmatpush1.bf16.msra.mxu0 %v221
    %287 = vmatprep.subr.bf16.mxu0 %v226
    %288 = vmatpush1.bf16.msra.mxu0 %v225
    %289 = vmatprep.subr.bf16.mxu0 %v230
    %290 = vmatpush1.bf16.msra.mxu0 %v229
    %291 = vmatprep.subr.bf16.mxu0 %v234
    %292 = vmatpush1.bf16.msra.mxu0 %v233
    %293 = vmatprep.subr.bf16.mxu0 %v238
    %294 = vmatpush1.bf16.msra.mxu0 %v237
    %295 = vmatprep.subr.bf16.mxu0 %v242
    %296 = vmatpush1.bf16.msra.mxu0 %v241
    %297 = vmatprep.subr.bf16.mxu0 %v246
    %298 = vmatpush1.bf16.msra.mxu0 %v245
    %299 = vmatprep.subr.bf16.mxu0 %v250
    %300 = vmatpush1.bf16.msra.mxu0 %v249
    %301 = vmatprep.subr.bf16.mxu0 0
    %302 = vmatpush1.bf16.msra.mxu0 0
    %303 = vmatprep.subr.bf16.mxu0 0
    %304 = vmatpush1.bf16.msra.mxu0 0
    %305 = vmatprep.subr.bf16.mxu0 0
    %306 = vmatpush1.bf16.msra.mxu0 0
    %307 = vmatprep.subr.bf16.mxu0 0
    %308 = vmatpush1.bf16.msra.mxu0 0
    %309 = vmatprep.subr.bf16.mxu0 0
    %310 = vmatpush1.bf16.msra.mxu0 0
    %311 = vmatprep.subr.bf16.mxu0 0
    %312 = vmatpush1.bf16.msra.mxu0 0
    %313 = vmatprep.subr.bf16.mxu0 0
    %314 = vmatpush1.bf16.msra.mxu0 0
    %315 = vmatprep.subr.bf16.mxu0 0
    %316 = vmatpush1.bf16.msra.mxu0 0
    %317 = vmatprep.mubr.bf16.mxu0 0
    %318 = vmatmul.mubr.bf16.gmra.mrb[0].mxu0 %v124
    %v319 = vpop.f32.mrb[0].mxu0
    %v320 = vadd.f32 0.0, %v319
    %v321 = vpop.f32.mrb[0].mxu0
    %v322 = vadd.f32 0.0, %v321
    %v323 = vpop.f32.mrb[0].mxu0
    %v324 = vpop.f32.mrb[0].mxu0
    %325 = vdwg.mxu0
    %326 = vmatprep.subr.bf16.mxu0 %v224
    %327 = vmatpush1.bf16.msra.mxu0 %v223
    %328 = vmatprep.subr.bf16.mxu0 %v228
    %329 = vmatpush1.bf16.msra.mxu0 %v227
    %330 = vmatprep.subr.bf16.mxu0 %v232
    %331 = vmatpush1.bf16.msra.mxu0 %v231
    %332 = vmatprep.subr.bf16.mxu0 %v236
    %333 = vmatpush1.bf16.msra.mxu0 %v235
    %334 = vmatprep.subr.bf16.mxu0 %v240
    %335 = vmatpush1.bf16.msra.mxu0 %v239
    %336 = vmatprep.subr.bf16.mxu0 %v244
    %337 = vmatpush1.bf16.msra.mxu0 %v243
    %338 = vmatprep.subr.bf16.mxu0 %v248
    %339 = vmatpush1.bf16.msra.mxu0 %v247
    %340 = vmatprep.subr.bf16.mxu0 %v252
    %341 = vmatpush1.bf16.msra.mxu0 %v251
    %342 = vmatprep.subr.bf16.mxu0 0
    %343 = vmatpush1.bf16.msra.mxu0 0
    %344 = vmatprep.subr.bf16.mxu0 0
    %345 = vmatpush1.bf16.msra.mxu0 0
    %346 = vmatprep.subr.bf16.mxu0 0
    %347 = vmatpush1.bf16.msra.mxu0 0
    %348 = vmatprep.subr.bf16.mxu0 0
    %349 = vmatpush1.bf16.msra.mxu0 0
    %350 = vmatprep.subr.bf16.mxu0 0
    %351 = vmatpush1.bf16.msra.mxu0 0
    %352 = vmatprep.subr.bf16.mxu0 0
    %353 = vmatpush1.bf16.msra.mxu0 0
    %354 = vmatprep.subr.bf16.mxu0 0
    %355 = vmatpush1.bf16.msra.mxu0 0
    %356 = vmatprep.subr.bf16.mxu0 0
    %357 = vmatpush1.bf16.msra.mxu0 0
    %358 = vmatprep.mubr.bf16.mxu0 0
    %359 = vmatmul.mubr.bf16.gmra.mrb[0].mxu0 %v124
    %v360 = vpop.f32.mrb[0].mxu0
    %v361 = vadd.f32 0.0, %v360
    %v362 = vpop.f32.mrb[0].mxu0
    %v363 = vadd.f32 0.0, %v362
    %v364 = vpop.f32.mrb[0].mxu0
    %v365 = vpop.f32.mrb[0].mxu0
    %366 = vdwg.mxu0
    %v367 = vlaneseq
    %v368 = vshrl.u32 %v367, 7
    %v369 = vsub.s32 0, %v368
    %v370 = vrot.slane %v117, %v369
    %v371 = vlaneseq
    %v372 = vshrl.u32 %v371, 7
    %v373 = vsub.s32 0, %v372
    %v374 = vrot.slane %v118, %v373
    %v375 = vlaneseq
    %v376 = vshrl.u32 %v375, 7
    %v377 = vsub.s32 0, %v376
    %v378 = vrot.slane %v119, %v377
    %v379 = vlaneseq
    %v380 = vshrl.u32 %v379, 7
    %v381 = vsub.s32 0, %v380
    %v382 = vrot.slane %v120, %v381
    %v383 = vmul.f32 %v370, %v320
    %v384 = vmul.f32 %v374, %v322
    %v385 = vmul.f32 %v378, %v361
    %v386 = vmul.f32 %v382, %v363
    %v387 = vadd.f32 %v383, 0.0
    %v388 = vadd.f32 %v384, 0.0
    %v389 = vadd.f32 %v385, 0.0
    %v390 = vadd.f32 %v386, 0.0
    %vm391 = vcmp.eq.s32.totalorder %v84, 1
    %v392 = vsel %vm391, 1, 0
    %v393 = vcvt.s32.f32 %v392
    %v394 = vpack.c.bf16 %v393, %v393
    %395 = vmatprep.subr.bf16.mxu0 %v222
    %396 = vmatpush1.bf16.msra.mxu0 %v221
    %397 = vmatprep.subr.bf16.mxu0 %v226
    %398 = vmatpush1.bf16.msra.mxu0 %v225
    %399 = vmatprep.subr.bf16.mxu0 %v230
    %400 = vmatpush1.bf16.msra.mxu0 %v229
    %401 = vmatprep.subr.bf16.mxu0 %v234
    %402 = vmatpush1.bf16.msra.mxu0 %v233
    %403 = vmatprep.subr.bf16.mxu0 %v238
    %404 = vmatpush1.bf16.msra.mxu0 %v237
    %405 = vmatprep.subr.bf16.mxu0 %v242
    %406 = vmatpush1.bf16.msra.mxu0 %v241
    %407 = vmatprep.subr.bf16.mxu0 %v246
    %408 = vmatpush1.bf16.msra.mxu0 %v245
    %409 = vmatprep.subr.bf16.mxu0 %v250
    %410 = vmatpush1.bf16.msra.mxu0 %v249
    %411 = vmatprep.subr.bf16.mxu0 0
    %412 = vmatpush1.bf16.msra.mxu0 0
    %413 = vmatprep.subr.bf16.mxu0 0
    %414 = vmatpush1.bf16.msra.mxu0 0
    %415 = vmatprep.subr.bf16.mxu0 0
    %416 = vmatpush1.bf16.msra.mxu0 0
    %417 = vmatprep.subr.bf16.mxu0 0
    %418 = vmatpush1.bf16.msra.mxu0 0
    %419 = vmatprep.subr.bf16.mxu0 0
    %420 = vmatpush1.bf16.msra.mxu0 0
    %421 = vmatprep.subr.bf16.mxu0 0
    %422 = vmatpush1.bf16.msra.mxu0 0
    %423 = vmatprep.subr.bf16.mxu0 0
    %424 = vmatpush1.bf16.msra.mxu0 0
    %425 = vmatprep.subr.bf16.mxu0 0
    %426 = vmatpush1.bf16.msra.mxu0 0
    %427 = vmatprep.mubr.bf16.mxu0 0
    %428 = vmatmul.mubr.bf16.gmra.mrb[0].mxu0 %v394
    %v429 = vpop.f32.mrb[0].mxu0
    %v430 = vadd.f32 0.0, %v429
    %v431 = vpop.f32.mrb[0].mxu0
    %v432 = vadd.f32 0.0, %v431
    %v433 = vpop.f32.mrb[0].mxu0
    %v434 = vpop.f32.mrb[0].mxu0
    %435 = vdwg.mxu0
    %436 = vmatprep.subr.bf16.mxu0 %v224
    %437 = vmatpush1.bf16.msra.mxu0 %v223
    %438 = vmatprep.subr.bf16.mxu0 %v228
    %439 = vmatpush1.bf16.msra.mxu0 %v227
    %440 = vmatprep.subr.bf16.mxu0 %v232
    %441 = vmatpush1.bf16.msra.mxu0 %v231
    %442 = vmatprep.subr.bf16.mxu0 %v236
    %443 = vmatpush1.bf16.msra.mxu0 %v235
    %444 = vmatprep.subr.bf16.mxu0 %v240
    %445 = vmatpush1.bf16.msra.mxu0 %v239
    %446 = vmatprep.subr.bf16.mxu0 %v244
    %447 = vmatpush1.bf16.msra.mxu0 %v243
    %448 = vmatprep.subr.bf16.mxu0 %v248
    %449 = vmatpush1.bf16.msra.mxu0 %v247
    %450 = vmatprep.subr.bf16.mxu0 %v252
    %451 = vmatpush1.bf16.msra.mxu0 %v251
    %452 = vmatprep.subr.bf16.mxu0 0
    %453 = vmatpush1.bf16.msra.mxu0 0
    %454 = vmatprep.subr.bf16.mxu0 0
    %455 = vmatpush1.bf16.msra.mxu0 0
    %456 = vmatprep.subr.bf16.mxu0 0
    %457 = vmatpush1.bf16.msra.mxu0 0
    %458 = vmatprep.subr.bf16.mxu0 0
    %459 = vmatpush1.bf16.msra.mxu0 0
    %460 = vmatprep.subr.bf16.mxu0 0
    %461 = vmatpush1.bf16.msra.mxu0 0
    %462 = vmatprep.subr.bf16.mxu0 0
    %463 = vmatpush1.bf16.msra.mxu0 0
    %464 = vmatprep.subr.bf16.mxu0 0
    %465 = vmatpush1.bf16.msra.mxu0 0
    %466 = vmatprep.subr.bf16.mxu0 0
    %467 = vmatpush1.bf16.msra.mxu0 0
    %468 = vmatprep.mubr.bf16.mxu0 0
    %469 = vmatmul.mubr.bf16.gmra.mrb[0].mxu0 %v394
    %v470 = vpop.f32.mrb[0].mxu0
    %v471 = vadd.f32 0.0, %v470
    %v472 = vpop.f32.mrb[0].mxu0
    %v473 = vadd.f32 0.0, %v472
    %v474 = vpop.f32.mrb[0].mxu0
    %v475 = vpop.f32.mrb[0].mxu0
    %476 = vdwg.mxu0
    %v477 = vlaneseq
    %v478 = vshrl.u32 %v477, 7
    %v479 = vsub.s32 1, %v478
    %v480 = vrot.slane %v117, %v479
    %v481 = vlaneseq
    %v482 = vshrl.u32 %v481, 7
    %v483 = vsub.s32 1, %v482
    %v484 = vrot.slane %v118, %v483
    %v485 = vlaneseq
    %v486 = vshrl.u32 %v485, 7
    %v487 = vsub.s32 1, %v486
    %v488 = vrot.slane %v119, %v487
    %v489 = vlaneseq
    %v490 = vshrl.u32 %v489, 7
    %v491 = vsub.s32 1, %v490
    %v492 = vrot.slane %v120, %v491
    %v493 = vmul.f32 %v480, %v430
    %v494 = vmul.f32 %v484, %v432
    %v495 = vmul.f32 %v488, %v471
    %v496 = vmul.f32 %v492, %v473
    %v497 = vadd.f32 %v387, %v493
    %v498 = vadd.f32 %v388, %v494
    %v499 = vadd.f32 %v389, %v495
    %v500 = vadd.f32 %v390, %v496
    %vm501 = vcmp.eq.s32.totalorder %v84, 2
    %v502 = vsel %vm501, 1, 0
    %v503 = vcvt.s32.f32 %v502
    %v504 = vpack.c.bf16 %v503, %v503
    %505 = vmatprep.subr.bf16.mxu0 %v222
    %506 = vmatpush1.bf16.msra.mxu0 %v221
    %507 = vmatprep.subr.bf16.mxu0 %v226
    %508 = vmatpush1.bf16.msra.mxu0 %v225
    %509 = vmatprep.subr.bf16.mxu0 %v230
    %510 = vmatpush1.bf16.msra.mxu0 %v229
    %511 = vmatprep.subr.bf16.mxu0 %v234
    %512 = vmatpush1.bf16.msra.mxu0 %v233
    %513 = vmatprep.subr.bf16.mxu0 %v238
    %514 = vmatpush1.bf16.msra.mxu0 %v237
    %515 = vmatprep.subr.bf16.mxu0 %v242
    %516 = vmatpush1.bf16.msra.mxu0 %v241
    %517 = vmatprep.subr.bf16.mxu0 %v246
    %518 = vmatpush1.bf16.msra.mxu0 %v245
    %519 = vmatprep.subr.bf16.mxu0 %v250
    %520 = vmatpush1.bf16.msra.mxu0 %v249
    %521 = vmatprep.subr.bf16.mxu0 0
    %522 = vmatpush1.bf16.msra.mxu0 0
    %523 = vmatprep.subr.bf16.mxu0 0
    %524 = vmatpush1.bf16.msra.mxu0 0
    %525 = vmatprep.subr.bf16.mxu0 0
    %526 = vmatpush1.bf16.msra.mxu0 0
    %527 = vmatprep.subr.bf16.mxu0 0
    %528 = vmatpush1.bf16.msra.mxu0 0
    %529 = vmatprep.subr.bf16.mxu0 0
    %530 = vmatpush1.bf16.msra.mxu0 0
    %531 = vmatprep.subr.bf16.mxu0 0
    %532 = vmatpush1.bf16.msra.mxu0 0
    %533 = vmatprep.subr.bf16.mxu0 0
    %534 = vmatpush1.bf16.msra.mxu0 0
    %535 = vmatprep.subr.bf16.mxu0 0
    %536 = vmatpush1.bf16.msra.mxu0 0
    %537 = vmatprep.mubr.bf16.mxu0 0
    %538 = vmatmul.mubr.bf16.gmra.mrb[0].mxu0 %v504
    %v539 = vpop.f32.mrb[0].mxu0
    %v540 = vadd.f32 0.0, %v539
    %v541 = vpop.f32.mrb[0].mxu0
    %v542 = vadd.f32 0.0, %v541
    %v543 = vpop.f32.mrb[0].mxu0
    %v544 = vpop.f32.mrb[0].mxu0
    %545 = vdwg.mxu0
    %546 = vmatprep.subr.bf16.mxu0 %v224
    %547 = vmatpush1.bf16.msra.mxu0 %v223
    %548 = vmatprep.subr.bf16.mxu0 %v228
    %549 = vmatpush1.bf16.msra.mxu0 %v227
    %550 = vmatprep.subr.bf16.mxu0 %v232
    %551 = vmatpush1.bf16.msra.mxu0 %v231
    %552 = vmatprep.subr.bf16.mxu0 %v236
    %553 = vmatpush1.bf16.msra.mxu0 %v235
    %554 = vmatprep.subr.bf16.mxu0 %v240
    %555 = vmatpush1.bf16.msra.mxu0 %v239
    %556 = vmatprep.subr.bf16.mxu0 %v244
    %557 = vmatpush1.bf16.msra.mxu0 %v243
    %558 = vmatprep.subr.bf16.mxu0 %v248
    %559 = vmatpush1.bf16.msra.mxu0 %v247
    %560 = vmatprep.subr.bf16.mxu0 %v252
    %561 = vmatpush1.bf16.msra.mxu0 %v251
    %562 = vmatprep.subr.bf16.mxu0 0
    %563 = vmatpush1.bf16.msra.mxu0 0
    %564 = vmatprep.subr.bf16.mxu0 0
    %565 = vmatpush1.bf16.msra.mxu0 0
    %566 = vmatprep.subr.bf16.mxu0 0
    %567 = vmatpush1.bf16.msra.mxu0 0
    %568 = vmatprep.subr.bf16.mxu0 0
    %569 = vmatpush1.bf16.msra.mxu0 0
    %570 = vmatprep.subr.bf16.mxu0 0
    %571 = vmatpush1.bf16.msra.mxu0 0
    %572 = vmatprep.subr.bf16.mxu0 0
    %573 = vmatpush1.bf16.msra.mxu0 0
    %574 = vmatprep.subr.bf16.mxu0 0
    %575 = vmatpush1.bf16.msra.mxu0 0
    %576 = vmatprep.subr.bf16.mxu0 0
    %577 = vmatpush1.bf16.msra.mxu0 0
    %578 = vmatprep.mubr.bf16.mxu0 0
    %579 = vmatmul.mubr.bf16.gmra.mrb[0].mxu0 %v504
    %v580 = vpop.f32.mrb[0].mxu0
    %v581 = vadd.f32 0.0, %v580
    %v582 = vpop.f32.mrb[0].mxu0
    %v583 = vadd.f32 0.0, %v582
    %v584 = vpop.f32.mrb[0].mxu0
    %v585 = vpop.f32.mrb[0].mxu0
    %586 = vdwg.mxu0
    %v587 = vlaneseq
    %v588 = vshrl.u32 %v587, 7
    %v589 = vsub.s32 2, %v588
    %v590 = vrot.slane %v117, %v589
    %v591 = vlaneseq
    %v592 = vshrl.u32 %v591, 7
    %v593 = vsub.s32 2, %v592
    %v594 = vrot.slane %v118, %v593
    %v595 = vlaneseq
    %v596 = vshrl.u32 %v595, 7
    %v597 = vsub.s32 2, %v596
    %v598 = vrot.slane %v119, %v597
    %v599 = vlaneseq
    %v600 = vshrl.u32 %v599, 7
    %v601 = vsub.s32 2, %v600
    %v602 = vrot.slane %v120, %v601
    %v603 = vmul.f32 %v590, %v540
    %v604 = vmul.f32 %v594, %v542
    %v605 = vmul.f32 %v598, %v581
    %v606 = vmul.f32 %v602, %v583
    %v607 = vadd.f32 %v497, %v603
    %v608 = vadd.f32 %v498, %v604
    %v609 = vadd.f32 %v499, %v605
    %v610 = vadd.f32 %v500, %v606
    %vm611 = vcmp.eq.s32.totalorder %v84, 3
    %v612 = vsel %vm611, 1, 0
    %v613 = vcvt.s32.f32 %v612
    %v614 = vpack.c.bf16 %v613, %v613
    %615 = vmatprep.subr.bf16.mxu0 %v222
    %616 = vmatpush1.bf16.msra.mxu0 %v221
    %617 = vmatprep.subr.bf16.mxu0 %v226
    %618 = vmatpush1.bf16.msra.mxu0 %v225
    %619 = vmatprep.subr.bf16.mxu0 %v230
    %620 = vmatpush1.bf16.msra.mxu0 %v229
    %621 = vmatprep.subr.bf16.mxu0 %v234
    %622 = vmatpush1.bf16.msra.mxu0 %v233
    %623 = vmatprep.subr.bf16.mxu0 %v238
    %624 = vmatpush1.bf16.msra.mxu0 %v237
    %625 = vmatprep.subr.bf16.mxu0 %v242
    %626 = vmatpush1.bf16.msra.mxu0 %v241
    %627 = vmatprep.subr.bf16.mxu0 %v246
    %628 = vmatpush1.bf16.msra.mxu0 %v245
    %629 = vmatprep.subr.bf16.mxu0 %v250
    %630 = vmatpush1.bf16.msra.mxu0 %v249
    %631 = vmatprep.subr.bf16.mxu0 0
    %632 = vmatpush1.bf16.msra.mxu0 0
    %633 = vmatprep.subr.bf16.mxu0 0
    %634 = vmatpush1.bf16.msra.mxu0 0
    %635 = vmatprep.subr.bf16.mxu0 0
    %636 = vmatpush1.bf16.msra.mxu0 0
    %637 = vmatprep.subr.bf16.mxu0 0
    %638 = vmatpush1.bf16.msra.mxu0 0
    %639 = vmatprep.subr.bf16.mxu0 0
    %640 = vmatpush1.bf16.msra.mxu0 0
    %641 = vmatprep.subr.bf16.mxu0 0
    %642 = vmatpush1.bf16.msra.mxu0 0
    %643 = vmatprep.subr.bf16.mxu0 0
    %644 = vmatpush1.bf16.msra.mxu0 0
    %645 = vmatprep.subr.bf16.mxu0 0
    %646 = vmatpush1.bf16.msra.mxu0 0
    %647 = vmatprep.mubr.bf16.mxu0 0
    %648 = vmatmul.mubr.bf16.gmra.mrb[0].mxu0 %v614
    %v649 = vpop.f32.mrb[0].mxu0
    %v650 = vadd.f32 0.0, %v649
    %v651 = vpop.f32.mrb[0].mxu0
    %v652 = vadd.f32 0.0, %v651
    %v653 = vpop.f32.mrb[0].mxu0
    %v654 = vpop.f32.mrb[0].mxu0
    %655 = vdwg.mxu0
    %656 = vmatprep.subr.bf16.mxu0 %v224
    %657 = vmatpush1.bf16.msra.mxu0 %v223
    %658 = vmatprep.subr.bf16.mxu0 %v228
    %659 = vmatpush1.bf16.msra.mxu0 %v227
    %660 = vmatprep.subr.bf16.mxu0 %v232
    %661 = vmatpush1.bf16.msra.mxu0 %v231
    %662 = vmatprep.subr.bf16.mxu0 %v236
    %663 = vmatpush1.bf16.msra.mxu0 %v235
    %664 = vmatprep.subr.bf16.mxu0 %v240
    %665 = vmatpush1.bf16.msra.mxu0 %v239
    %666 = vmatprep.subr.bf16.mxu0 %v244
    %667 = vmatpush1.bf16.msra.mxu0 %v243
    %668 = vmatprep.subr.bf16.mxu0 %v248
    %669 = vmatpush1.bf16.msra.mxu0 %v247
    %670 = vmatprep.subr.bf16.mxu0 %v252
    %671 = vmatpush1.bf16.msra.mxu0 %v251
    %672 = vmatprep.subr.bf16.mxu0 0
    %673 = vmatpush1.bf16.msra.mxu0 0
    %674 = vmatprep.subr.bf16.mxu0 0
    %675 = vmatpush1.bf16.msra.mxu0 0
    %676 = vmatprep.subr.bf16.mxu0 0
    %677 = vmatpush1.bf16.msra.mxu0 0
    %678 = vmatprep.subr.bf16.mxu0 0
    %679 = vmatpush1.bf16.msra.mxu0 0
    %680 = vmatprep.subr.bf16.mxu0 0
    %681 = vmatpush1.bf16.msra.mxu0 0
    %682 = vmatprep.subr.bf16.mxu0 0
    %683 = vmatpush1.bf16.msra.mxu0 0
    %684 = vmatprep.subr.bf16.mxu0 0
    %685 = vmatpush1.bf16.msra.mxu0 0
    %686 = vmatprep.subr.bf16.mxu0 0
    %687 = vmatpush1.bf16.msra.mxu0 0
    %688 = vmatprep.mubr.bf16.mxu0 0
    %689 = vmatmul.mubr.bf16.gmra.mrb[0].mxu0 %v614
    %v690 = vpop.f32.mrb[0].mxu0
    %v691 = vadd.f32 0.0, %v690
    %v692 = vpop.f32.mrb[0].mxu0
    %v693 = vadd.f32 0.0, %v692
    %v694 = vpop.f32.mrb[0].mxu0
    %v695 = vpop.f32.mrb[0].mxu0
    %696 = vdwg.mxu0
    %v697 = vlaneseq
    %v698 = vshrl.u32 %v697, 7
    %v699 = vsub.s32 3, %v698
    %v700 = vrot.slane %v117, %v699
    %v701 = vlaneseq
    %v702 = vshrl.u32 %v701, 7
    %v703 = vsub.s32 3, %v702
    %v704 = vrot.slane %v118, %v703
    %v705 = vlaneseq
    %v706 = vshrl.u32 %v705, 7
    %v707 = vsub.s32 3, %v706
    %v708 = vrot.slane %v119, %v707
    %v709 = vlaneseq
    %v710 = vshrl.u32 %v709, 7
    %v711 = vsub.s32 3, %v710
    %v712 = vrot.slane %v120, %v711
    %v713 = vmul.f32 %v700, %v650
    %v714 = vmul.f32 %v704, %v652
    %v715 = vmul.f32 %v708, %v691
    %v716 = vmul.f32 %v712, %v693
    %v717 = vadd.f32 %v607, %v713
    %v718 = vadd.f32 %v608, %v714
    %v719 = vadd.f32 %v609, %v715
    %v720 = vadd.f32 %v610, %v716
    %vm721 = vcmp.eq.s32.totalorder %v84, 4
    %v722 = vsel %vm721, 1, 0
    %v723 = vcvt.s32.f32 %v722
    %v724 = vpack.c.bf16 %v723, %v723
    %725 = vmatprep.subr.bf16.mxu0 %v222
    %726 = vmatpush1.bf16.msra.mxu0 %v221
    %727 = vmatprep.subr.bf16.mxu0 %v226
    %728 = vmatpush1.bf16.msra.mxu0 %v225
    %729 = vmatprep.subr.bf16.mxu0 %v230
    %730 = vmatpush1.bf16.msra.mxu0 %v229
    %731 = vmatprep.subr.bf16.mxu0 %v234
    %732 = vmatpush1.bf16.msra.mxu0 %v233
    %733 = vmatprep.subr.bf16.mxu0 %v238
    %734 = vmatpush1.bf16.msra.mxu0 %v237
    %735 = vmatprep.subr.bf16.mxu0 %v242
    %736 = vmatpush1.bf16.msra.mxu0 %v241
    %737 = vmatprep.subr.bf16.mxu0 %v246
    %738 = vmatpush1.bf16.msra.mxu0 %v245
    %739 = vmatprep.subr.bf16.mxu0 %v250
    %740 = vmatpush1.bf16.msra.mxu0 %v249
    %741 = vmatprep.subr.bf16.mxu0 0
    %742 = vmatpush1.bf16.msra.mxu0 0
    %743 = vmatprep.subr.bf16.mxu0 0
    %744 = vmatpush1.bf16.msra.mxu0 0
    %745 = vmatprep.subr.bf16.mxu0 0
    %746 = vmatpush1.bf16.msra.mxu0 0
    %747 = vmatprep.subr.bf16.mxu0 0
    %748 = vmatpush1.bf16.msra.mxu0 0
    %749 = vmatprep.subr.bf16.mxu0 0
    %750 = vmatpush1.bf16.msra.mxu0 0
    %751 = vmatprep.subr.bf16.mxu0 0
    %752 = vmatpush1.bf16.msra.mxu0 0
    %753 = vmatprep.subr.bf16.mxu0 0
    %754 = vmatpush1.bf16.msra.mxu0 0
    %755 = vmatprep.subr.bf16.mxu0 0
    %756 = vmatpush1.bf16.msra.mxu0 0
    %757 = vmatprep.mubr.bf16.mxu0 0
    %758 = vmatmul.mubr.bf16.gmra.mrb[0].mxu0 %v724
    %v759 = vpop.f32.mrb[0].mxu0
    %v760 = vadd.f32 0.0, %v759
    %v761 = vpop.f32.mrb[0].mxu0
    %v762 = vadd.f32 0.0, %v761
    %v763 = vpop.f32.mrb[0].mxu0
    %v764 = vpop.f32.mrb[0].mxu0
    %765 = vdwg.mxu0
    %766 = vmatprep.subr.bf16.mxu0 %v224
    %767 = vmatpush1.bf16.msra.mxu0 %v223
    %768 = vmatprep.subr.bf16.mxu0 %v228
    %769 = vmatpush1.bf16.msra.mxu0 %v227
    %770 = vmatprep.subr.bf16.mxu0 %v232
    %771 = vmatpush1.bf16.msra.mxu0 %v231
    %772 = vmatprep.subr.bf16.mxu0 %v236
    %773 = vmatpush1.bf16.msra.mxu0 %v235
    %774 = vmatprep.subr.bf16.mxu0 %v240
    %775 = vmatpush1.bf16.msra.mxu0 %v239
    %776 = vmatprep.subr.bf16.mxu0 %v244
    %777 = vmatpush1.bf16.msra.mxu0 %v243
    %778 = vmatprep.subr.bf16.mxu0 %v248
    %779 = vmatpush1.bf16.msra.mxu0 %v247
    %780 = vmatprep.subr.bf16.mxu0 %v252
    %781 = vmatpush1.bf16.msra.mxu0 %v251
    %782 = vmatprep.subr.bf16.mxu0 0
    %783 = vmatpush1.bf16.msra.mxu0 0
    %784 = vmatprep.subr.bf16.mxu0 0
    %785 = vmatpush1.bf16.msra.mxu0 0
    %786 = vmatprep.subr.bf16.mxu0 0
    %787 = vmatpush1.bf16.msra.mxu0 0
    %788 = vmatprep.subr.bf16.mxu0 0
    %789 = vmatpush1.bf16.msra.mxu0 0
    %790 = vmatprep.subr.bf16.mxu0 0
    %791 = vmatpush1.bf16.msra.mxu0 0
    %792 = vmatprep.subr.bf16.mxu0 0
    %793 = vmatpush1.bf16.msra.mxu0 0
    %794 = vmatprep.subr.bf16.mxu0 0
    %795 = vmatpush1.bf16.msra.mxu0 0
    %796 = vmatprep.subr.bf16.mxu0 0
    %797 = vmatpush1.bf16.msra.mxu0 0
    %798 = vmatprep.mubr.bf16.mxu0 0
    %799 = vmatmul.mubr.bf16.gmra.mrb[0].mxu0 %v724
    %v800 = vpop.f32.mrb[0].mxu0
    %v801 = vadd.f32 0.0, %v800
    %v802 = vpop.f32.mrb[0].mxu0
    %v803 = vadd.f32 0.0, %v802
    %v804 = vpop.f32.mrb[0].mxu0
    %v805 = vpop.f32.mrb[0].mxu0
    %806 = vdwg.mxu0
    %v807 = vlaneseq
    %v808 = vshrl.u32 %v807, 7
    %v809 = vsub.s32 4, %v808
    %v810 = vrot.slane %v117, %v809
    %v811 = vlaneseq
    %v812 = vshrl.u32 %v811, 7
    %v813 = vsub.s32 4, %v812
    %v814 = vrot.slane %v118, %v813
    %v815 = vlaneseq
    %v816 = vshrl.u32 %v815, 7
    %v817 = vsub.s32 4, %v816
    %v818 = vrot.slane %v119, %v817
    %v819 = vlaneseq
    %v820 = vshrl.u32 %v819, 7
    %v821 = vsub.s32 4, %v820
    %v822 = vrot.slane %v120, %v821
    %v823 = vmul.f32 %v810, %v760
    %v824 = vmul.f32 %v814, %v762
    %v825 = vmul.f32 %v818, %v801
    %v826 = vmul.f32 %v822, %v803
    %v827 = vadd.f32 %v717, %v823
    %v828 = vadd.f32 %v718, %v824
    %v829 = vadd.f32 %v719, %v825
    %v830 = vadd.f32 %v720, %v826
    %vm831 = vcmp.eq.s32.totalorder %v84, 5
    %v832 = vsel %vm831, 1, 0
    %v833 = vcvt.s32.f32 %v832
    %v834 = vpack.c.bf16 %v833, %v833
    %835 = vmatprep.subr.bf16.mxu0 %v222
    %836 = vmatpush1.bf16.msra.mxu0 %v221
    %837 = vmatprep.subr.bf16.mxu0 %v226
    %838 = vmatpush1.bf16.msra.mxu0 %v225
    %839 = vmatprep.subr.bf16.mxu0 %v230
    %840 = vmatpush1.bf16.msra.mxu0 %v229
    %841 = vmatprep.subr.bf16.mxu0 %v234
    %842 = vmatpush1.bf16.msra.mxu0 %v233
    %843 = vmatprep.subr.bf16.mxu0 %v238
    %844 = vmatpush1.bf16.msra.mxu0 %v237
    %845 = vmatprep.subr.bf16.mxu0 %v242
    %846 = vmatpush1.bf16.msra.mxu0 %v241
    %847 = vmatprep.subr.bf16.mxu0 %v246
    %848 = vmatpush1.bf16.msra.mxu0 %v245
    %849 = vmatprep.subr.bf16.mxu0 %v250
    %850 = vmatpush1.bf16.msra.mxu0 %v249
    %851 = vmatprep.subr.bf16.mxu0 0
    %852 = vmatpush1.bf16.msra.mxu0 0
    %853 = vmatprep.subr.bf16.mxu0 0
    %854 = vmatpush1.bf16.msra.mxu0 0
    %855 = vmatprep.subr.bf16.mxu0 0
    %856 = vmatpush1.bf16.msra.mxu0 0
    %857 = vmatprep.subr.bf16.mxu0 0
    %858 = vmatpush1.bf16.msra.mxu0 0
    %859 = vmatprep.subr.bf16.mxu0 0
    %860 = vmatpush1.bf16.msra.mxu0 0
    %861 = vmatprep.subr.bf16.mxu0 0
    %862 = vmatpush1.bf16.msra.mxu0 0
    %863 = vmatprep.subr.bf16.mxu0 0
    %864 = vmatpush1.bf16.msra.mxu0 0
    %865 = vmatprep.subr.bf16.mxu0 0
    %866 = vmatpush1.bf16.msra.mxu0 0
    %867 = vmatprep.mubr.bf16.mxu0 0
    %868 = vmatmul.mubr.bf16.gmra.mrb[0].mxu0 %v834
    %v869 = vpop.f32.mrb[0].mxu0
    %v870 = vadd.f32 0.0, %v869
    %v871 = vpop.f32.mrb[0].mxu0
    %v872 = vadd.f32 0.0, %v871
    %v873 = vpop.f32.mrb[0].mxu0
    %v874 = vpop.f32.mrb[0].mxu0
    %875 = vdwg.mxu0
    %876 = vmatprep.subr.bf16.mxu0 %v224
    %877 = vmatpush1.bf16.msra.mxu0 %v223
    %878 = vmatprep.subr.bf16.mxu0 %v228
    %879 = vmatpush1.bf16.msra.mxu0 %v227
    %880 = vmatprep.subr.bf16.mxu0 %v232
    %881 = vmatpush1.bf16.msra.mxu0 %v231
    %882 = vmatprep.subr.bf16.mxu0 %v236
    %883 = vmatpush1.bf16.msra.mxu0 %v235
    %884 = vmatprep.subr.bf16.mxu0 %v240
    %885 = vmatpush1.bf16.msra.mxu0 %v239
    %886 = vmatprep.subr.bf16.mxu0 %v244
    %887 = vmatpush1.bf16.msra.mxu0 %v243
    %888 = vmatprep.subr.bf16.mxu0 %v248
    %889 = vmatpush1.bf16.msra.mxu0 %v247
    %890 = vmatprep.subr.bf16.mxu0 %v252
    %891 = vmatpush1.bf16.msra.mxu0 %v251
    %892 = vmatprep.subr.bf16.mxu0 0
    %893 = vmatpush1.bf16.msra.mxu0 0
    %894 = vmatprep.subr.bf16.mxu0 0
    %895 = vmatpush1.bf16.msra.mxu0 0
    %896 = vmatprep.subr.bf16.mxu0 0
    %897 = vmatpush1.bf16.msra.mxu0 0
    %898 = vmatprep.subr.bf16.mxu0 0
    %899 = vmatpush1.bf16.msra.mxu0 0
    %900 = vmatprep.subr.bf16.mxu0 0
    %901 = vmatpush1.bf16.msra.mxu0 0
    %902 = vmatprep.subr.bf16.mxu0 0
    %903 = vmatpush1.bf16.msra.mxu0 0
    %904 = vmatprep.subr.bf16.mxu0 0
    %905 = vmatpush1.bf16.msra.mxu0 0
    %906 = vmatprep.subr.bf16.mxu0 0
    %907 = vmatpush1.bf16.msra.mxu0 0
    %908 = vmatprep.mubr.bf16.mxu0 0
    %909 = vmatmul.mubr.bf16.gmra.mrb[0].mxu0 %v834
    %v910 = vpop.f32.mrb[0].mxu0
    %v911 = vadd.f32 0.0, %v910
    %v912 = vpop.f32.mrb[0].mxu0
    %v913 = vadd.f32 0.0, %v912
    %v914 = vpop.f32.mrb[0].mxu0
    %v915 = vpop.f32.mrb[0].mxu0
    %916 = vdwg.mxu0
    %v917 = vlaneseq
    %v918 = vshrl.u32 %v917, 7
    %v919 = vsub.s32 5, %v918
    %v920 = vrot.slane %v117, %v919
    %v921 = vlaneseq
    %v922 = vshrl.u32 %v921, 7
    %v923 = vsub.s32 5, %v922
    %v924 = vrot.slane %v118, %v923
    %v925 = vlaneseq
    %v926 = vshrl.u32 %v925, 7
    %v927 = vsub.s32 5, %v926
    %v928 = vrot.slane %v119, %v927
    %v929 = vlaneseq
    %v930 = vshrl.u32 %v929, 7
    %v931 = vsub.s32 5, %v930
    %v932 = vrot.slane %v120, %v931
    %v933 = vmul.f32 %v920, %v870
    %v934 = vmul.f32 %v924, %v872
    %v935 = vmul.f32 %v928, %v911
    %v936 = vmul.f32 %v932, %v913
    %v937 = vadd.f32 %v827, %v933
    %v938 = vadd.f32 %v828, %v934
    %v939 = vadd.f32 %v829, %v935
    %v940 = vadd.f32 %v830, %v936
    %vm941 = vcmp.eq.s32.totalorder %v84, 6
    %v942 = vsel %vm941, 1, 0
    %v943 = vcvt.s32.f32 %v942
    %v944 = vpack.c.bf16 %v943, %v943
    %945 = vmatprep.subr.bf16.mxu0 %v222
    %946 = vmatpush1.bf16.msra.mxu0 %v221
    %947 = vmatprep.subr.bf16.mxu0 %v226
    %948 = vmatpush1.bf16.msra.mxu0 %v225
    %949 = vmatprep.subr.bf16.mxu0 %v230
    %950 = vmatpush1.bf16.msra.mxu0 %v229
    %951 = vmatprep.subr.bf16.mxu0 %v234
    %952 = vmatpush1.bf16.msra.mxu0 %v233
    %953 = vmatprep.subr.bf16.mxu0 %v238
    %954 = vmatpush1.bf16.msra.mxu0 %v237
    %955 = vmatprep.subr.bf16.mxu0 %v242
    %956 = vmatpush1.bf16.msra.mxu0 %v241
    %957 = vmatprep.subr.bf16.mxu0 %v246
    %958 = vmatpush1.bf16.msra.mxu0 %v245
    %959 = vmatprep.subr.bf16.mxu0 %v250
    %960 = vmatpush1.bf16.msra.mxu0 %v249
    %961 = vmatprep.subr.bf16.mxu0 0
    %962 = vmatpush1.bf16.msra.mxu0 0
    %963 = vmatprep.subr.bf16.mxu0 0
    %964 = vmatpush1.bf16.msra.mxu0 0
    %965 = vmatprep.subr.bf16.mxu0 0
    %966 = vmatpush1.bf16.msra.mxu0 0
    %967 = vmatprep.subr.bf16.mxu0 0
    %968 = vmatpush1.bf16.msra.mxu0 0
    %969 = vmatprep.subr.bf16.mxu0 0
    %970 = vmatpush1.bf16.msra.mxu0 0
    %971 = vmatprep.subr.bf16.mxu0 0
    %972 = vmatpush1.bf16.msra.mxu0 0
    %973 = vmatprep.subr.bf16.mxu0 0
    %974 = vmatpush1.bf16.msra.mxu0 0
    %975 = vmatprep.subr.bf16.mxu0 0
    %976 = vmatpush1.bf16.msra.mxu0 0
    %977 = vmatprep.mubr.bf16.mxu0 0
    %978 = vmatmul.mubr.bf16.gmra.mrb[0].mxu0 %v944
    %v979 = vpop.f32.mrb[0].mxu0
    %v980 = vadd.f32 0.0, %v979
    %v981 = vpop.f32.mrb[0].mxu0
    %v982 = vadd.f32 0.0, %v981
    %v983 = vpop.f32.mrb[0].mxu0
    %v984 = vpop.f32.mrb[0].mxu0
    %985 = vdwg.mxu0
    %986 = vmatprep.subr.bf16.mxu0 %v224
    %987 = vmatpush1.bf16.msra.mxu0 %v223
    %988 = vmatprep.subr.bf16.mxu0 %v228
    %989 = vmatpush1.bf16.msra.mxu0 %v227
    %990 = vmatprep.subr.bf16.mxu0 %v232
    %991 = vmatpush1.bf16.msra.mxu0 %v231
    %992 = vmatprep.subr.bf16.mxu0 %v236
    %993 = vmatpush1.bf16.msra.mxu0 %v235
    %994 = vmatprep.subr.bf16.mxu0 %v240
    %995 = vmatpush1.bf16.msra.mxu0 %v239
    %996 = vmatprep.subr.bf16.mxu0 %v244
    %997 = vmatpush1.bf16.msra.mxu0 %v243
    %998 = vmatprep.subr.bf16.mxu0 %v248
    %999 = vmatpush1.bf16.msra.mxu0 %v247
    %1000 = vmatprep.subr.bf16.mxu0 %v252
    %1001 = vmatpush1.bf16.msra.mxu0 %v251
    %1002 = vmatprep.subr.bf16.mxu0 0
    %1003 = vmatpush1.bf16.msra.mxu0 0
    %1004 = vmatprep.subr.bf16.mxu0 0
    %1005 = vmatpush1.bf16.msra.mxu0 0
    %1006 = vmatprep.subr.bf16.mxu0 0
    %1007 = vmatpush1.bf16.msra.mxu0 0
    %1008 = vmatprep.subr.bf16.mxu0 0
    %1009 = vmatpush1.bf16.msra.mxu0 0
    %1010 = vmatprep.subr.bf16.mxu0 0
    %1011 = vmatpush1.bf16.msra.mxu0 0
    %1012 = vmatprep.subr.bf16.mxu0 0
    %1013 = vmatpush1.bf16.msra.mxu0 0
    %1014 = vmatprep.subr.bf16.mxu0 0
    %1015 = vmatpush1.bf16.msra.mxu0 0
    %1016 = vmatprep.subr.bf16.mxu0 0
    %1017 = vmatpush1.bf16.msra.mxu0 0
    %1018 = vmatprep.mubr.bf16.mxu0 0
    %1019 = vmatmul.mubr.bf16.gmra.mrb[0].mxu0 %v944
    %v1020 = vpop.f32.mrb[0].mxu0
    %v1021 = vadd.f32 0.0, %v1020
    %v1022 = vpop.f32.mrb[0].mxu0
    %v1023 = vadd.f32 0.0, %v1022
    %v1024 = vpop.f32.mrb[0].mxu0
    %v1025 = vpop.f32.mrb[0].mxu0
    %1026 = vdwg.mxu0
    %v1027 = vlaneseq
    %v1028 = vshrl.u32 %v1027, 7
    %v1029 = vsub.s32 6, %v1028
    %v1030 = vrot.slane %v117, %v1029
    %v1031 = vlaneseq
    %v1032 = vshrl.u32 %v1031, 7
    %v1033 = vsub.s32 6, %v1032
    %v1034 = vrot.slane %v118, %v1033
    %v1035 = vlaneseq
    %v1036 = vshrl.u32 %v1035, 7
    %v1037 = vsub.s32 6, %v1036
    %v1038 = vrot.slane %v119, %v1037
    %v1039 = vlaneseq
    %v1040 = vshrl.u32 %v1039, 7
    %v1041 = vsub.s32 6, %v1040
    %v1042 = vrot.slane %v120, %v1041
    %v1043 = vmul.f32 %v1030, %v980
    %v1044 = vmul.f32 %v1034, %v982
    %v1045 = vmul.f32 %v1038, %v1021
    %v1046 = vmul.f32 %v1042, %v1023
    %v1047 = vadd.f32 %v937, %v1043
    %v1048 = vadd.f32 %v938, %v1044
    %v1049 = vadd.f32 %v939, %v1045
    %v1050 = vadd.f32 %v940, %v1046
    %vm1051 = vcmp.eq.s32.totalorder %v84, 7
    %v1052 = vsel %vm1051, 1, 0
    %v1053 = vcvt.s32.f32 %v1052
    %v1054 = vpack.c.bf16 %v1053, %v1053
    %1055 = vmatprep.subr.bf16.mxu0 %v222
    %1056 = vmatpush1.bf16.msra.mxu0 %v221
    %1057 = vmatprep.subr.bf16.mxu0 %v226
    %1058 = vmatpush1.bf16.msra.mxu0 %v225
    %1059 = vmatprep.subr.bf16.mxu0 %v230
    %1060 = vmatpush1.bf16.msra.mxu0 %v229
    %1061 = vmatprep.subr.bf16.mxu0 %v234
    %1062 = vmatpush1.bf16.msra.mxu0 %v233
    %1063 = vmatprep.subr.bf16.mxu0 %v238
    %1064 = vmatpush1.bf16.msra.mxu0 %v237
    %1065 = vmatprep.subr.bf16.mxu0 %v242
    %1066 = vmatpush1.bf16.msra.mxu0 %v241
    %1067 = vmatprep.subr.bf16.mxu0 %v246
    %1068 = vmatpush1.bf16.msra.mxu0 %v245
    %1069 = vmatprep.subr.bf16.mxu0 %v250
    %1070 = vmatpush1.bf16.msra.mxu0 %v249
    %1071 = vmatprep.subr.bf16.mxu0 0
    %1072 = vmatpush1.bf16.msra.mxu0 0
    %1073 = vmatprep.subr.bf16.mxu0 0
    %1074 = vmatpush1.bf16.msra.mxu0 0
    %1075 = vmatprep.subr.bf16.mxu0 0
    %1076 = vmatpush1.bf16.msra.mxu0 0
    %1077 = vmatprep.subr.bf16.mxu0 0
    %1078 = vmatpush1.bf16.msra.mxu0 0
    %1079 = vmatprep.subr.bf16.mxu0 0
    %1080 = vmatpush1.bf16.msra.mxu0 0
    %1081 = vmatprep.subr.bf16.mxu0 0
    %1082 = vmatpush1.bf16.msra.mxu0 0
    %1083 = vmatprep.subr.bf16.mxu0 0
    %1084 = vmatpush1.bf16.msra.mxu0 0
    %1085 = vmatprep.subr.bf16.mxu0 0
    %1086 = vmatpush1.bf16.msra.mxu0 0
    %1087 = vmatprep.mubr.bf16.mxu0 0
    %1088 = vmatmul.mubr.bf16.gmra.mrb[0].mxu0 %v1054
    %v1089 = vpop.f32.mrb[0].mxu0
    %v1090 = vadd.f32 0.0, %v1089
    %v1091 = vpop.f32.mrb[0].mxu0
    %v1092 = vadd.f32 0.0, %v1091
    %v1093 = vpop.f32.mrb[0].mxu0
    %v1094 = vpop.f32.mrb[0].mxu0
    %1095 = vdwg.mxu0
    %1096 = vmatprep.subr.bf16.mxu0 %v224
    %1097 = vmatpush1.bf16.msra.mxu0 %v223
    %1098 = vmatprep.subr.bf16.mxu0 %v228
    %1099 = vmatpush1.bf16.msra.mxu0 %v227
    %1100 = vmatprep.subr.bf16.mxu0 %v232
    %1101 = vmatpush1.bf16.msra.mxu0 %v231
    %1102 = vmatprep.subr.bf16.mxu0 %v236
    %1103 = vmatpush1.bf16.msra.mxu0 %v235
    %1104 = vmatprep.subr.bf16.mxu0 %v240
    %1105 = vmatpush1.bf16.msra.mxu0 %v239
    %1106 = vmatprep.subr.bf16.mxu0 %v244
    %1107 = vmatpush1.bf16.msra.mxu0 %v243
    %1108 = vmatprep.subr.bf16.mxu0 %v248
    %1109 = vmatpush1.bf16.msra.mxu0 %v247
    %1110 = vmatprep.subr.bf16.mxu0 %v252
    %1111 = vmatpush1.bf16.msra.mxu0 %v251
    %1112 = vmatprep.subr.bf16.mxu0 0
    %1113 = vmatpush1.bf16.msra.mxu0 0
    %1114 = vmatprep.subr.bf16.mxu0 0
    %1115 = vmatpush1.bf16.msra.mxu0 0
    %1116 = vmatprep.subr.bf16.mxu0 0
    %1117 = vmatpush1.bf16.msra.mxu0 0
    %1118 = vmatprep.subr.bf16.mxu0 0
    %1119 = vmatpush1.bf16.msra.mxu0 0
    %1120 = vmatprep.subr.bf16.mxu0 0
    %1121 = vmatpush1.bf16.msra.mxu0 0
    %1122 = vmatprep.subr.bf16.mxu0 0
    %1123 = vmatpush1.bf16.msra.mxu0 0
    %1124 = vmatprep.subr.bf16.mxu0 0
    %1125 = vmatpush1.bf16.msra.mxu0 0
    %1126 = vmatprep.subr.bf16.mxu0 0
    %1127 = vmatpush1.bf16.msra.mxu0 0
    %1128 = vmatprep.mubr.bf16.mxu0 0
    %1129 = vmatmul.mubr.bf16.gmra.mrb[0].mxu0 %v1054
    %v1130 = vpop.f32.mrb[0].mxu0
    %v1131 = vadd.f32 0.0, %v1130
    %v1132 = vpop.f32.mrb[0].mxu0
    %v1133 = vadd.f32 0.0, %v1132
    %v1134 = vpop.f32.mrb[0].mxu0
    %v1135 = vpop.f32.mrb[0].mxu0
    %1136 = vdwg.mxu0
    %v1137 = vlaneseq
    %v1138 = vshrl.u32 %v1137, 7
    %v1139 = vsub.s32 7, %v1138
    %v1140 = vrot.slane %v117, %v1139
    %v1141 = vlaneseq
    %v1142 = vshrl.u32 %v1141, 7
    %v1143 = vsub.s32 7, %v1142
    %v1144 = vrot.slane %v118, %v1143
    %v1145 = vlaneseq
    %v1146 = vshrl.u32 %v1145, 7
    %v1147 = vsub.s32 7, %v1146
    %v1148 = vrot.slane %v119, %v1147
    %v1149 = vlaneseq
    %v1150 = vshrl.u32 %v1149, 7
    %v1151 = vsub.s32 7, %v1150
    %v1152 = vrot.slane %v120, %v1151
    %v1153 = vmul.f32 %v1140, %v1090
    %v1154 = vmul.f32 %v1144, %v1092
    %v1155 = vmul.f32 %v1148, %v1131
    %v1156 = vmul.f32 %v1152, %v1133
    %v1157 = vadd.f32 %v1047, %v1153
    %v1158 = vadd.f32 %v1048, %v1154
    %v1159 = vadd.f32 %v1049, %v1155
    %v1160 = vadd.f32 %v1050, %v1156
    %v1161 = vld [vmem:[#allocation10] sm:$0xff]
    %v1162 = vld [vmem:[#allocation8] sm:$0xff]
    %v1163 = vld [vmem:[#allocation8 + $0x8] sm:$0xff]
    %v1164 = vld [vmem:[#allocation8 + $0x10] sm:$0xff]
    %v1165 = vld [vmem:[#allocation8 + $0x18] sm:$0xff]
    %v1166 = vld [vmem:[#allocation8 + $0x20] sm:$0xff]
    %v1167 = vld [vmem:[#allocation8 + $0x28] sm:$0xff]
    %v1168 = vld [vmem:[#allocation8 + $0x30] sm:$0xff]
    %v1169 = vld [vmem:[#allocation8 + $0x38] sm:$0xff]
    %v1170 = vld [vmem:[#allocation8 + $0x40] sm:$0xff]
    %v1171 = vld [vmem:[#allocation8 + $0x48] sm:$0xff]
    %v1172 = vld [vmem:[#allocation8 + $0x50] sm:$0xff]
    %v1173 = vld [vmem:[#allocation8 + $0x58] sm:$0xff]
    %v1174 = vld [vmem:[#allocation8 + $0x60] sm:$0xff]
    %v1175 = vld [vmem:[#allocation8 + $0x68] sm:$0xff]
    %v1176 = vld [vmem:[#allocation8 + $0x70] sm:$0xff]
    %v1177 = vld [vmem:[#allocation8 + $0x78] sm:$0xff]
    %v1178 = vld [vmem:[#allocation8 + $0x80] sm:$0xff]
    %v1179 = vld [vmem:[#allocation8 + $0x88] sm:$0xff]
    %v1180 = vld [vmem:[#allocation8 + $0x90] sm:$0xff]
    %v1181 = vld [vmem:[#allocation8 + $0x98] sm:$0xff]
    %v1182 = vld [vmem:[#allocation8 + $0xa0] sm:$0xff]
    %v1183 = vld [vmem:[#allocation8 + $0xa8] sm:$0xff]
    %v1184 = vld [vmem:[#allocation8 + $0xb0] sm:$0xff]
    %v1185 = vld [vmem:[#allocation8 + $0xb8] sm:$0xff]
    %v1186 = vld [vmem:[#allocation8 + $0xc0] sm:$0xff]
    %v1187 = vld [vmem:[#allocation8 + $0xc8] sm:$0xff]
    %v1188 = vld [vmem:[#allocation8 + $0xd0] sm:$0xff]
    %v1189 = vld [vmem:[#allocation8 + $0xd8] sm:$0xff]
    %v1190 = vld [vmem:[#allocation8 + $0xe0] sm:$0xff]
    %v1191 = vld [vmem:[#allocation8 + $0xe8] sm:$0xff]
    %v1192 = vld [vmem:[#allocation8 + $0xf0] sm:$0xff]
    %v1193 = vld [vmem:[#allocation8 + $0xf8] sm:$0xff]
    %v1194 = vld [vmem:[#allocation8 + $0x100] sm:$0xff]
    %v1195 = vld [vmem:[#allocation8 + $0x108] sm:$0xff]
    %v1196 = vld [vmem:[#allocation8 + $0x110] sm:$0xff]
    %v1197 = vld [vmem:[#allocation8 + $0x118] sm:$0xff]
    %v1198 = vld [vmem:[#allocation8 + $0x120] sm:$0xff]
    %v1199 = vld [vmem:[#allocation8 + $0x128] sm:$0xff]
    %v1200 = vld [vmem:[#allocation8 + $0x130] sm:$0xff]
    %v1201 = vld [vmem:[#allocation8 + $0x138] sm:$0xff]
    %v1202 = vld [vmem:[#allocation8 + $0x140] sm:$0xff]
    %v1203 = vld [vmem:[#allocation8 + $0x148] sm:$0xff]
    %v1204 = vld [vmem:[#allocation8 + $0x150] sm:$0xff]
    %v1205 = vld [vmem:[#allocation8 + $0x158] sm:$0xff]
    %v1206 = vld [vmem:[#allocation8 + $0x160] sm:$0xff]
    %v1207 = vld [vmem:[#allocation8 + $0x168] sm:$0xff]
    %v1208 = vld [vmem:[#allocation8 + $0x170] sm:$0xff]
    %v1209 = vld [vmem:[#allocation8 + $0x178] sm:$0xff]
    %v1210 = vld [vmem:[#allocation8 + $0x180] sm:$0xff]
    %v1211 = vld [vmem:[#allocation8 + $0x188] sm:$0xff]
    %v1212 = vld [vmem:[#allocation8 + $0x190] sm:$0xff]
    %v1213 = vld [vmem:[#allocation8 + $0x198] sm:$0xff]
    %v1214 = vld [vmem:[#allocation8 + $0x1a0] sm:$0xff]
    %v1215 = vld [vmem:[#allocation8 + $0x1a8] sm:$0xff]
    %v1216 = vld [vmem:[#allocation8 + $0x1b0] sm:$0xff]
    %v1217 = vld [vmem:[#allocation8 + $0x1b8] sm:$0xff]
    %v1218 = vld [vmem:[#allocation8 + $0x1c0] sm:$0xff]
    %v1219 = vld [vmem:[#allocation8 + $0x1c8] sm:$0xff]
    %v1220 = vld [vmem:[#allocation8 + $0x1d0] sm:$0xff]
    %v1221 = vld [vmem:[#allocation8 + $0x1d8] sm:$0xff]
    %v1222 = vld [vmem:[#allocation8 + $0x1e0] sm:$0xff]
    %v1223 = vld [vmem:[#allocation8 + $0x1e8] sm:$0xff]
    %v1224 = vld [vmem:[#allocation8 + $0x1f0] sm:$0xff]
    %v1225 = vld [vmem:[#allocation8 + $0x1f8] sm:$0xff]
    %1226 = vmatprep.subr.mxu0 0.0
    %1227 = vmatpush1.msra.mxu0 %v1162
    %1228 = vmatprep.subr.mxu0 0.0
    %1229 = vmatpush1.msra.mxu0 %v1163
    %1230 = vmatprep.subr.mxu0 0.0
    %1231 = vmatpush1.msra.mxu0 %v1164
    %1232 = vmatprep.subr.mxu0 0.0
    %1233 = vmatpush1.msra.mxu0 %v1165
    %1234 = vmatprep.subr.mxu0 0.0
    %1235 = vmatpush1.msra.mxu0 %v1166
    %1236 = vmatprep.subr.mxu0 0.0
    %1237 = vmatpush1.msra.mxu0 %v1167
    %1238 = vmatprep.subr.mxu0 0.0
    %1239 = vmatpush1.msra.mxu0 %v1168
    %1240 = vmatprep.subr.mxu0 0.0
    %1241 = vmatpush1.msra.mxu0 %v1169
    %1242 = vmatprep.subr.mxu0 0.0
    %1243 = vmatpush1.msra.mxu0 %v1170
    %1244 = vmatprep.subr.mxu0 0.0
    %1245 = vmatpush1.msra.mxu0 %v1171
    %1246 = vmatprep.subr.mxu0 0.0
    %1247 = vmatpush1.msra.mxu0 %v1172
    %1248 = vmatprep.subr.mxu0 0.0
    %1249 = vmatpush1.msra.mxu0 %v1173
    %1250 = vmatprep.subr.mxu0 0.0
    %1251 = vmatpush1.msra.mxu0 %v1174
    %1252 = vmatprep.subr.mxu0 0.0
    %1253 = vmatpush1.msra.mxu0 %v1175
    %1254 = vmatprep.subr.mxu0 0.0
    %1255 = vmatpush1.msra.mxu0 %v1176
    %1256 = vmatprep.subr.mxu0 0.0
    %1257 = vmatpush1.msra.mxu0 %v1177
    %1258 = vmatprep.subr.mxu0 0.0
    %1259 = vmatpush1.msra.mxu0 %v1178
    %1260 = vmatprep.subr.mxu0 0.0
    %1261 = vmatpush1.msra.mxu0 %v1179
    %1262 = vmatprep.subr.mxu0 0.0
    %1263 = vmatpush1.msra.mxu0 %v1180
    %1264 = vmatprep.subr.mxu0 0.0
    %1265 = vmatpush1.msra.mxu0 %v1181
    %1266 = vmatprep.subr.mxu0 0.0
    %1267 = vmatpush1.msra.mxu0 %v1182
    %1268 = vmatprep.subr.mxu0 0.0
    %1269 = vmatpush1.msra.mxu0 %v1183
    %1270 = vmatprep.subr.mxu0 0.0
    %1271 = vmatpush1.msra.mxu0 %v1184
    %1272 = vmatprep.subr.mxu0 0.0
    %1273 = vmatpush1.msra.mxu0 %v1185
    %1274 = vmatprep.subr.mxu0 0.0
    %1275 = vmatpush1.msra.mxu0 %v1186
    %1276 = vmatprep.subr.mxu0 0.0
    %1277 = vmatpush1.msra.mxu0 %v1187
    %1278 = vmatprep.subr.mxu0 0.0
    %1279 = vmatpush1.msra.mxu0 %v1188
    %1280 = vmatprep.subr.mxu0 0.0
    %1281 = vmatpush1.msra.mxu0 %v1189
    %1282 = vmatprep.subr.mxu0 0.0
    %1283 = vmatpush1.msra.mxu0 %v1190
    %1284 = vmatprep.subr.mxu0 0.0
    %1285 = vmatpush1.msra.mxu0 %v1191
    %1286 = vmatprep.subr.mxu0 0.0
    %1287 = vmatpush1.msra.mxu0 %v1192
    %1288 = vmatprep.subr.mxu0 0.0
    %1289 = vmatpush1.msra.mxu0 %v1193
    %1290 = vmatprep.mubr.f32.mxu0 %v1158
    %1291 = vmatmul.mubr.f32.gmra.mrb[0].mxu0 %v1157
    %v1292 = vpop.f32.mrb[0].mxu0
    %v1293 = vadd.f32 0.0, %v1292
    %v1294 = vpop.f32.mrb[0].mxu0
    %1295 = vdwg.mxu0
    %1296 = vmatprep.subr.mxu0 0.0
    %1297 = vmatpush1.msra.mxu0 %v1194
    %1298 = vmatprep.subr.mxu0 0.0
    %1299 = vmatpush1.msra.mxu0 %v1195
    %1300 = vmatprep.subr.mxu0 0.0
    %1301 = vmatpush1.msra.mxu0 %v1196
    %1302 = vmatprep.subr.mxu0 0.0
    %1303 = vmatpush1.msra.mxu0 %v1197
    %1304 = vmatprep.subr.mxu0 0.0
    %1305 = vmatpush1.msra.mxu0 %v1198
    %1306 = vmatprep.subr.mxu0 0.0
    %1307 = vmatpush1.msra.mxu0 %v1199
    %1308 = vmatprep.subr.mxu0 0.0
    %1309 = vmatpush1.msra.mxu0 %v1200
    %1310 = vmatprep.subr.mxu0 0.0
    %1311 = vmatpush1.msra.mxu0 %v1201
    %1312 = vmatprep.subr.mxu0 0.0
    %1313 = vmatpush1.msra.mxu0 %v1202
    %1314 = vmatprep.subr.mxu0 0.0
    %1315 = vmatpush1.msra.mxu0 %v1203
    %1316 = vmatprep.subr.mxu0 0.0
    %1317 = vmatpush1.msra.mxu0 %v1204
    %1318 = vmatprep.subr.mxu0 0.0
    %1319 = vmatpush1.msra.mxu0 %v1205
    %1320 = vmatprep.subr.mxu0 0.0
    %1321 = vmatpush1.msra.mxu0 %v1206
    %1322 = vmatprep.subr.mxu0 0.0
    %1323 = vmatpush1.msra.mxu0 %v1207
    %1324 = vmatprep.subr.mxu0 0.0
    %1325 = vmatpush1.msra.mxu0 %v1208
    %1326 = vmatprep.subr.mxu0 0.0
    %1327 = vmatpush1.msra.mxu0 %v1209
    %1328 = vmatprep.subr.mxu0 0.0
    %1329 = vmatpush1.msra.mxu0 %v1210
    %1330 = vmatprep.subr.mxu0 0.0
    %1331 = vmatpush1.msra.mxu0 %v1211
    %1332 = vmatprep.subr.mxu0 0.0
    %1333 = vmatpush1.msra.mxu0 %v1212
    %1334 = vmatprep.subr.mxu0 0.0
    %1335 = vmatpush1.msra.mxu0 %v1213
    %1336 = vmatprep.subr.mxu0 0.0
    %1337 = vmatpush1.msra.mxu0 %v1214
    %1338 = vmatprep.subr.mxu0 0.0
    %1339 = vmatpush1.msra.mxu0 %v1215
    %1340 = vmatprep.subr.mxu0 0.0
    %1341 = vmatpush1.msra.mxu0 %v1216
    %1342 = vmatprep.subr.mxu0 0.0
    %1343 = vmatpush1.msra.mxu0 %v1217
    %1344 = vmatprep.subr.mxu0 0.0
    %1345 = vmatpush1.msra.mxu0 %v1218
    %1346 = vmatprep.subr.mxu0 0.0
    %1347 = vmatpush1.msra.mxu0 %v1219
    %1348 = vmatprep.subr.mxu0 0.0
    %1349 = vmatpush1.msra.mxu0 %v1220
    %1350 = vmatprep.subr.mxu0 0.0
    %1351 = vmatpush1.msra.mxu0 %v1221
    %1352 = vmatprep.subr.mxu0 0.0
    %1353 = vmatpush1.msra.mxu0 %v1222
    %1354 = vmatprep.subr.mxu0 0.0
    %1355 = vmatpush1.msra.mxu0 %v1223
    %1356 = vmatprep.subr.mxu0 0.0
    %1357 = vmatpush1.msra.mxu0 %v1224
    %1358 = vmatprep.subr.mxu0 0.0
    %1359 = vmatpush1.msra.mxu0 %v1225
    %1360 = vmatprep.mubr.f32.mxu0 %v1160
    %1361 = vmatmul.mubr.f32.gmra.mrb[0].mxu0 %v1159
    %v1362 = vpop.f32.mrb[0].mxu0
    %v1363 = vadd.f32 %v1293, %v1362
    %v1364 = vpop.f32.mrb[0].mxu0
    %1365 = vdwg.mxu0
    %v1366 = vadd.f32 %v1161, %v1363
    %1367 = vst [vmem:[#allocation10] sm:$0xff] %v1366
    // Predicated region
    $region38: #{tpu_custom_call.1} parent=1 // pred_check
      _
    $region39: #{tpu_custom_call.1} parent=1 // pred_check_branch
      %1369 = sbr.rel (0) target = $region41
    $region40: #{tpu_custom_call.1} parent=1 // pred_region
      %s1371 = ssub.s32 128, 128
      %1372 = vsyncadd [#allocation4], %s1371
      %s1374 = sshll.u32 [#allocation10], 4
      %s1375 = int_to_ptr.vmem [resolvable:$true] %s1374
      %1377 = dma.vmem_to_hbm [thread:$0]  %s1375, 128, %s4, [#allocation4]
    $region41: #{tpu_custom_call.1} parent=1 // pred_fallthru
      _
    // Predicated region
    $region42: #{tpu_custom_call.1} parent=1 // pred_check
      _
    $region43: #{tpu_custom_call.1} parent=1 // pred_check_branch
      %1379 = sbr.rel (0) target = $region45
    $region44: #{tpu_custom_call.1} parent=1 // pred_region
      %1380 = dma.done [#allocation4], 128
    $region45: #{tpu_custom_call.1} parent=1 // pred_fallthru
      _
    %1381 = vsyncpa [#allocation3], 1
    %1382 = vsyncpa [#allocation6], 1
    %1383 = vsyncpa [#allocation9], 1
    %1384 = vsyncpa [#allocation4], 1

</llo_original>
